<compile_context>
chip_gen: v7x
topology: tpu7x:2x2x1
jax: 0.10.0
libtpu: 0.0.40
codegen_flags: <defaults>
</compile_context>

<pallas_src>
import math

import jax
import jax.numpy as jnp
from jax.experimental import pallas as pl
from jax.experimental.pallas import tpu as pltpu


# ----------------------------------------------------------------------------
# Generation-aware VMEM budget & tile caps.
# ----------------------------------------------------------------------------
_MIB = 1024 * 1024
try:
    _VMEM_CAP = int(pltpu.get_tpu_info().vmem_capacity_bytes)
except Exception:                      # query unavailable -> conservative (v7x)
    _VMEM_CAP = 64 * _MIB
# Leave headroom for Mosaic internal scratch + double-buffered windows.
VMEM_LIMIT = max(min(_VMEM_CAP - 12 * _MIB, 100 * _MIB), 32 * _MIB)
TILE_N_MAX = 512 if _VMEM_CAP <= 64 * _MIB else 1024   # classifier row-tile cap


def _pick_batch_tile(batch, seq, target_rows=256, max_rows=1024):
    """Encoder batch tile: fill the MXU M dimension (>= target rows per step)
    when possible; otherwise keep >= 2 grid steps so v7x's 2 TCs both work."""
    divisors = [d for d in range(1, batch + 1) if batch % d == 0]
    # Output block is (d*seq, H): rows must be a multiple of 8 unless the block
    # covers the whole flattened output.
    legal = [d for d in divisors if (d * seq) % 8 == 0 or d == batch]
    if not legal:
        return batch
    hit = [d for d in legal if target_rows <= d * seq <= max_rows]
    if hit:
        return min(hit)                 # smallest that reaches target (more steps)
    multi = [d for d in legal if batch // d >= 2 and d * seq <= max_rows]
    if multi:
        return max(multi)               # biggest M while keeping >= 2 steps
    return min(legal)


def _pick_row_tile(n, cap):
    """Classifier row tile: multiple of 8 dividing n (no padding round trip),
    as large as the cap allows, preferring >= 2 tiles (v7x megacore)."""
    cands = [t for t in range(8, min(n, cap) + 1, 8) if n % t == 0]
    if not cands:
        return n                        # full-array block is always legal
    multi = [t for t in cands if n // t >= 2]
    return max(multi) if multi else max(cands)


# ----------------------------------------------------------------------------
# Kernel 1: transformer encoder layer (backbone stand-in), batch-tiled grid.
# ----------------------------------------------------------------------------
def _layernorm(x, g, b, eps=1e-5):
    mu = jnp.mean(x, axis=-1, keepdims=True)
    var = jnp.mean((x - mu) ** 2, axis=-1, keepdims=True)
    return (x - mu) * jax.lax.rsqrt(var + eps) * g + b


def encoder_layer_kernel(x_ref, negmask_ref,
                         wqkv, bqkv, wo, bo, ln1_g, ln1_b,
                         w1, b1, w2, b2, ln2_g, ln2_b,
                         out_ref):
    bt, S, H = x_ref.shape
    rows = bt * S
    x = x_ref[...].reshape(rows, H)                  # (rows, H) f32
    xb = x.astype(jnp.bfloat16)

    # Fused QKV: one (rows, H) x (H, 3H) MXU matmul; 1/sqrt(H) folded into Q.
    qkv = jnp.dot(xb, wqkv[...], preferred_element_type=jnp.float32) + bqkv[...]
    q = qkv[:, 0 * H:1 * H].reshape(bt, S, H).astype(jnp.bfloat16)
    k = qkv[:, 1 * H:2 * H].reshape(bt, S, H).astype(jnp.bfloat16)
    v = qkv[:, 2 * H:3 * H].reshape(bt, S, H).astype(jnp.bfloat16)

    # Per-sequence attention scores (batched on the MXU), f32 accumulation.
    scores = jnp.einsum('bqd,bkd->bqk', q, k, preferred_element_type=jnp.float32)
    scores = scores + negmask_ref[...]               # precomputed additive key mask
    scores = scores - jnp.max(scores, axis=-1, keepdims=True)
    p = jnp.exp(scores)
    attn = p * pl.reciprocal(jnp.sum(p, axis=-1, keepdims=True), approx=True)

    ctx = jnp.einsum('bqk,bkd->bqd', attn.astype(jnp.bfloat16), v,
                     preferred_element_type=jnp.float32)
    attn_out = jnp.dot(ctx.reshape(rows, H).astype(jnp.bfloat16), wo[...],
                       preferred_element_type=jnp.float32) + bo[...]
    h = _layernorm(x + attn_out, ln1_g[...], ln1_b[...])

    ff = jnp.dot(h.astype(jnp.bfloat16), w1[...],
                 preferred_element_type=jnp.float32) + b1[...]
    # TODO(synk): exact erf GELU (PyTorch default) approximated with tanh form.
    ff = jax.nn.gelu(ff, approximate=True)
    ff = jnp.dot(ff.astype(jnp.bfloat16), w2[...],
                 preferred_element_type=jnp.float32) + b2[...]
    out_ref[...] = _layernorm(h + ff, ln2_g[...], ln2_b[...]).astype(out_ref.dtype)


def encoder_layer(x, attention_mask, enc_params):
    """Backbone stand-in.  Grid over batch tiles; per-step activation blocks are
    pipelined by BlockSpec; weights live whole in VMEM (single-buffered).
    Output is written directly as the flattened (B*S, H) f32 hidden matrix the
    classifier consumes (no pad/reshape HBM round trip)."""
    B, S, H = x.shape
    N = B * S
    bt = _pick_batch_tile(B, S)
    rows = bt * S
    neg_mask = ((attention_mask.astype(jnp.float32) - 1.0) * 1e9).reshape(B, 1, S)

    weight_specs = [pl.BlockSpec(memory_space=pltpu.MemorySpace.VMEM)
                    for _ in enc_params]
    return pl.pallas_call(
        encoder_layer_kernel,
        out_shape=jax.ShapeDtypeStruct((N, H), jnp.float32),
        grid=(B // bt,),
        in_specs=[pl.BlockSpec((bt, S, H), lambda b: (b, 0, 0)),
                  pl.BlockSpec((bt, 1, S), lambda b: (b, 0, 0))] + weight_specs,
        out_specs=pl.BlockSpec((rows, H), lambda b: (b, 0)),
        compiler_params=pltpu.CompilerParams(
            dimension_semantics=("parallel",),
            vmem_limit_bytes=VMEM_LIMIT),
    )(x, neg_mask, *enc_params)


# ----------------------------------------------------------------------------
# Kernel 2: classifier (Linear -> ReLU -> Linear) fused with masked token-level
# cross entropy, row-tiled over N = B*S.
# ----------------------------------------------------------------------------
def classifier_ce_kernel(h_ref, labels_ref, mask_ref,
                         w1_ref, b1_ref, w2_ref, b2_ref,
                         logits_ref, loss_part_ref):
    h = h_ref[...].astype(jnp.bfloat16)                      # (TN, H)
    z = jnp.dot(h, w1_ref[...], preferred_element_type=jnp.float32) + b1_ref[...]
    z = jnp.maximum(z, 0.0)                                  # ReLU
    logits = jnp.dot(z.astype(jnp.bfloat16), w2_ref[...],
                     preferred_element_type=jnp.float32) + b2_ref[...]
    logits_ref[...] = logits                                 # lane-dense (TN, C) store

    # Fused masked cross entropy: partial sum for this row tile.
    labels = labels_ref[...]                                 # (TN, 1) int32
    mask = mask_ref[...]                                     # (TN, 1) f32; 1 = active
    row_max = jnp.max(logits, axis=-1, keepdims=True)
    lse = jnp.log(jnp.sum(jnp.exp(logits - row_max), axis=-1,
                          keepdims=True)) + row_max
    col = jax.lax.broadcasted_iota(jnp.int32, logits.shape, 1)
    picked = jnp.sum(jnp.where(col == labels, logits, 0.0),
                     axis=-1, keepdims=True)
    per_tok = jnp.where(mask > 0.0, lse - picked, 0.0)       # ignore_index via mask
    # Per-tile scalar written as a lane-dense (8,128) slab (VMEM tiling rule);
    # wrapper reads element [i, 0, 0].
    loss_part_ref[...] = jnp.full(loss_part_ref.shape, jnp.sum(per_tok),
                                  dtype=jnp.float32)


def classifier_with_loss(hidden2d, labels_col, mask_col, cls_params):
    n, H = hidden2d.shape
    C = cls_params["w2"].shape[1]
    tile_n = _pick_row_tile(n, TILE_N_MAX)
    assert n % tile_n == 0
    num_tiles = n // tile_n

    weight_spec = pl.BlockSpec(memory_space=pltpu.MemorySpace.VMEM)
    # NOTE: labels/mask stay as (n, 1) columns (lane-padded but tiny); moving
    # them to SMEM / lane-dense blocks is a minor win and not worth the risk.
    logits, loss_parts = pl.pallas_call(
        classifier_ce_kernel,
        out_shape=(jax.ShapeDtypeStruct((n, C), jnp.float32),
                   jax.ShapeDtypeStruct((num_tiles, 8, 128), jnp.float32)),
        grid=(num_tiles,),
        in_specs=[pl.BlockSpec((tile_n, H), lambda i: (i, 0)),
                  pl.BlockSpec((tile_n, 1), lambda i: (i, 0)),
                  pl.BlockSpec((tile_n, 1), lambda i: (i, 0)),
                  weight_spec, weight_spec, weight_spec, weight_spec],
        out_specs=(pl.BlockSpec((tile_n, C), lambda i: (i, 0)),
                   pl.BlockSpec((1, 8, 128), lambda i: (i, 0, 0))),
        compiler_params=pltpu.CompilerParams(
            dimension_semantics=("parallel",),
            vmem_limit_bytes=VMEM_LIMIT),
    )(hidden2d, labels_col, mask_col,
      cls_params["w1"], cls_params["b1"], cls_params["w2"], cls_params["b2"])
    return logits, loss_parts


# ----------------------------------------------------------------------------
# Parameter init (deterministic, in-script) and full forward.
# ----------------------------------------------------------------------------
def init_params(key, hidden_size, output_size, cls_hidden=2048):
    H, C = hidden_size, output_size
    FF = 4 * H
    keys = jax.random.split(key, 8)

    def lin(k, fan_in, fan_out, scale=1.0):
        w = jax.random.normal(k, (fan_in, fan_out), jnp.float32) * 0.02 * scale
        return w.astype(jnp.bfloat16)          # bf16 weights for MXU + half DMA

    zeros = lambda n: jnp.zeros((1, n), jnp.float32)
    ones = lambda n: jnp.ones((1, n), jnp.float32)

    inv_sqrt_h = 1.0 / math.sqrt(H)
    # Fused QKV weight; attention scale folded into the Q slice (bias is zero,
    # otherwise bq would be scaled identically).
    wqkv = jnp.concatenate([lin(keys[0], H, H, inv_sqrt_h),
                            lin(keys[1], H, H),
                            lin(keys[2], H, H)], axis=1)       # (H, 3H) bf16
    enc = [
        wqkv, zeros(3 * H),                    # wqkv, bqkv
        lin(keys[3], H, H), zeros(H),          # wo, bo
        ones(H), zeros(H),                     # ln1 gamma / beta
        lin(keys[4], H, FF), zeros(FF),        # ffn w1, b1
        lin(keys[5], FF, H), zeros(H),         # ffn w2, b2
        ones(H), zeros(H),                     # ln2 gamma / beta
    ]
    cls = {
        "w1": lin(keys[6], H, cls_hidden),
        "b1": zeros(cls_hidden),
        "w2": lin(keys[7], cls_hidden, C),
        "b2": zeros(C),
    }
    return enc, cls


def position_attack_plm_forward(x, labels, attention_mask, enc_params,
                                cls_params, output_size):
    """Mirrors PositionAttackPLM.forward: returns (logits, loss)."""
    B, S, H = x.shape
    N = B * S

    hidden2d = encoder_layer(x, attention_mask, enc_params)   # (N, H) f32, flat
    labels_col = labels.reshape(N, 1).astype(jnp.int32)
    mask_col = attention_mask.reshape(N, 1).astype(jnp.float32)

    logits2d, loss_parts = classifier_with_loss(hidden2d, labels_col, mask_col,
                                                cls_params)

    logits = logits2d.reshape(B, S, output_size)
    active = jnp.sum(mask_col)
    loss = jnp.sum(loss_parts[:, 0, 0]) / jnp.maximum(active, 1.0)
    return logits, loss


if __name__ == "__main__":
    # Small config consistent with the module, picked MXU/lane friendly:
    #   config.hidden_size = 128, config.max_position_embeddings = 256,
    #   classifier hidden = 2048 (hardcoded in the module), B=2, S=8.
    B, S, H, C = 2, 8, 128, 256

    key = jax.random.PRNGKey(0)
    k_x, k_lab, k_params = jax.random.split(key, 3)

    x = jax.random.normal(k_x, (B, S, H), jnp.float32)            # inputs_embeds
    labels = jax.random.randint(k_lab, (B, S), 0, C, jnp.int32)   # position labels
    attention_mask = jnp.array(
        [[1, 1, 1, 1, 1, 1, 1, 1],
         [1, 1, 1, 1, 1, 0, 0, 0]], dtype=jnp.int32)

    enc_params, cls_params = init_params(k_params, H, C)

    logits, loss = position_attack_plm_forward(
        x, labels, attention_mask, enc_params, cls_params, output_size=C)
    jax.block_until_ready((logits, loss))

    assert logits.shape == (B, S, C)
    assert loss.shape == ()
    assert bool(jnp.isfinite(loss))
    print("KERNEL_OK")
</pallas_src>

<mosaic_0001>
module attributes {stable_mosaic.version = 11 : i64} {
  func.func @encoder_layer_kernel(%arg0: i32, %arg1: memref<1x8x128xf32, #tpu.memory_space<vmem>>, %arg2: memref<1x1x8xf32, #tpu.memory_space<vmem>>, %arg3: memref<128x384xbf16, #tpu.memory_space<vmem>>, %arg4: memref<1x384xf32, #tpu.memory_space<vmem>>, %arg5: memref<128x128xbf16, #tpu.memory_space<vmem>>, %arg6: memref<1x128xf32, #tpu.memory_space<vmem>>, %arg7: memref<1x128xf32, #tpu.memory_space<vmem>>, %arg8: memref<1x128xf32, #tpu.memory_space<vmem>>, %arg9: memref<128x512xbf16, #tpu.memory_space<vmem>>, %arg10: memref<1x512xf32, #tpu.memory_space<vmem>>, %arg11: memref<512x128xbf16, #tpu.memory_space<vmem>>, %arg12: memref<1x128xf32, #tpu.memory_space<vmem>>, %arg13: memref<1x128xf32, #tpu.memory_space<vmem>>, %arg14: memref<1x128xf32, #tpu.memory_space<vmem>>, %arg15: memref<8x128xf32, #tpu.memory_space<vmem>>) attributes {dimension_semantics = [#tpu.dimension_semantics<parallel>], iteration_bounds = array<i64: 2>, scalar_prefetch = 0 : i64, scratch_operands = 0 : i64, tpu.core_type = #tpu.core_type<tc>, window_params = [{transform_indices = @transform_0, window_bounds = array<i64: 1, 8, 128>}, {transform_indices = @transform_1, window_bounds = array<i64: 1, 1, 8>}, {pipeline_mode = #tpu.pipeline_mode<synchronous>, transform_indices = @transform_2, window_bounds = array<i64: 128, 384>}, {pipeline_mode = #tpu.pipeline_mode<synchronous>, transform_indices = @transform_3, window_bounds = array<i64: 1, 384>}, {pipeline_mode = #tpu.pipeline_mode<synchronous>, transform_indices = @transform_4, window_bounds = array<i64: 128, 128>}, {pipeline_mode = #tpu.pipeline_mode<synchronous>, transform_indices = @transform_5, window_bounds = array<i64: 1, 128>}, {pipeline_mode = #tpu.pipeline_mode<synchronous>, transform_indices = @transform_6, window_bounds = array<i64: 1, 128>}, {pipeline_mode = #tpu.pipeline_mode<synchronous>, transform_indices = @transform_7, window_bounds = array<i64: 1, 128>}, {pipeline_mode = #tpu.pipeline_mode<synchronous>, transform_indices = @transform_8, window_bounds = array<i64: 128, 512>}, {pipeline_mode = #tpu.pipeline_mode<synchronous>, transform_indices = @transform_9, window_bounds = array<i64: 1, 512>}, {pipeline_mode = #tpu.pipeline_mode<synchronous>, transform_indices = @transform_10, window_bounds = array<i64: 512, 128>}, {pipeline_mode = #tpu.pipeline_mode<synchronous>, transform_indices = @transform_11, window_bounds = array<i64: 1, 128>}, {pipeline_mode = #tpu.pipeline_mode<synchronous>, transform_indices = @transform_12, window_bounds = array<i64: 1, 128>}, {pipeline_mode = #tpu.pipeline_mode<synchronous>, transform_indices = @transform_13, window_bounds = array<i64: 1, 128>}, {transform_indices = @transform_14, window_bounds = array<i64: 8, 128>}]} {
    %c0 = arith.constant 0 : index
    %c0_0 = arith.constant 0 : index
    %c0_1 = arith.constant 0 : index
    %0 = vector.load %arg1[%c0, %c0_0, %c0_1] : memref<1x8x128xf32, #tpu.memory_space<vmem>>, vector<1x8x128xf32>
    %1 = vector.shape_cast %0 : vector<1x8x128xf32> to vector<8x128xf32>
    %2 = arith.truncf %1 : vector<8x128xf32> to vector<8x128xbf16>
    %c0_2 = arith.constant 0 : index
    %c0_3 = arith.constant 0 : index
    %3 = vector.load %arg3[%c0_2, %c0_3] : memref<128x384xbf16, #tpu.memory_space<vmem>>, vector<128x384xbf16>
    %cst = arith.constant dense<0.000000e+00> : vector<8x384xf32>
    %4 = tpu.matmul %2, %3, %cst {dimension_numbers = #tpu.dot_dimension_numbers<[1], [0], [0], [1], [0, 0, 1, 1], [], []>} : vector<8x128xbf16>, vector<128x384xbf16>, vector<8x384xf32> -> vector<8x384xf32>
    %c0_4 = arith.constant 0 : index
    %c0_5 = arith.constant 0 : index
    %5 = vector.load %arg4[%c0_4, %c0_5] : memref<1x384xf32, #tpu.memory_space<vmem>>, vector<1x384xf32>
    %6 = vector.broadcast %5 : vector<1x384xf32> to vector<8x384xf32>
    %7 = arith.addf %4, %6 : vector<8x384xf32>
    %8 = vector.extract_strided_slice %7 {offsets = [0, 0], sizes = [8, 128], strides = [1, 1]} : vector<8x384xf32> to vector<8x128xf32>
    %9 = vector.shape_cast %8 : vector<8x128xf32> to vector<1x8x128xf32>
    %10 = arith.truncf %9 : vector<1x8x128xf32> to vector<1x8x128xbf16>
    %11 = vector.extract_strided_slice %7 {offsets = [0, 128], sizes = [8, 128], strides = [1, 1]} : vector<8x384xf32> to vector<8x128xf32>
    %12 = vector.shape_cast %11 : vector<8x128xf32> to vector<1x8x128xf32>
    %13 = arith.truncf %12 : vector<1x8x128xf32> to vector<1x8x128xbf16>
    %14 = vector.extract_strided_slice %7 {offsets = [0, 256], sizes = [8, 128], strides = [1, 1]} : vector<8x384xf32> to vector<8x128xf32>
    %15 = vector.shape_cast %14 : vector<8x128xf32> to vector<1x8x128xf32>
    %16 = arith.truncf %15 : vector<1x8x128xf32> to vector<1x8x128xbf16>
    "tpu.trace_start"() <{level = 10 : i32, message = "bqd,bkd->bqk"}> : () -> ()
    %cst_6 = arith.constant dense<0.000000e+00> : vector<1x8x8xf32>
    %17 = tpu.matmul %10, %13, %cst_6 {dimension_numbers = #tpu.dot_dimension_numbers<[2], [2], [1], [1], [0, 0, 0, 1, 1, 1], [0], [0]>} : vector<1x8x128xbf16>, vector<1x8x128xbf16>, vector<1x8x8xf32> -> vector<1x8x8xf32>
    "tpu.trace_stop"() : () -> ()
    %c0_7 = arith.constant 0 : index
    %c0_8 = arith.constant 0 : index
    %c0_9 = arith.constant 0 : index
    %18 = vector.load %arg2[%c0_7, %c0_8, %c0_9] : memref<1x1x8xf32, #tpu.memory_space<vmem>>, vector<1x1x8xf32>
    %19 = vector.broadcast %18 : vector<1x1x8xf32> to vector<1x8x8xf32>
    %20 = arith.addf %17, %19 : vector<1x8x8xf32>
    %cst_10 = arith.constant dense<0xFF800000> : vector<1x8xf32>
    %21 = vector.multi_reduction <maximumf>, %20, %cst_10 [2] : vector<1x8x8xf32> to vector<1x8xf32>
    %22 = vector.shape_cast %21 : vector<1x8xf32> to vector<1x8x1xf32>
    %23 = vector.broadcast %22 : vector<1x8x1xf32> to vector<1x8x8xf32>
    %24 = arith.subf %20, %23 : vector<1x8x8xf32>
    %25 = math.exp %24 : vector<1x8x8xf32>
    %cst_11 = arith.constant dense<0.000000e+00> : vector<1x8xf32>
    %26 = vector.multi_reduction <add>, %25, %cst_11 [2] : vector<1x8x8xf32> to vector<1x8xf32>
    %27 = vector.shape_cast %26 : vector<1x8xf32> to vector<1x8x1xf32>
    %28 = tpu.reciprocal %27 {approx = true} : vector<1x8x1xf32> -> vector<1x8x1xf32>
    %29 = vector.broadcast %28 : vector<1x8x1xf32> to vector<1x8x8xf32>
    %30 = arith.mulf %25, %29 : vector<1x8x8xf32>
    %31 = arith.truncf %30 : vector<1x8x8xf32> to vector<1x8x8xbf16>
    "tpu.trace_start"() <{level = 10 : i32, message = "bqk,bkd->bqd"}> : () -> ()
    %cst_12 = arith.constant dense<0.000000e+00> : vector<1x8x128xf32>
    %32 = tpu.matmul %31, %16, %cst_12 {dimension_numbers = #tpu.dot_dimension_numbers<[2], [1], [1], [2], [0, 0, 0, 1, 1, 2], [0], [0]>} : vector<1x8x8xbf16>, vector<1x8x128xbf16>, vector<1x8x128xf32> -> vector<1x8x128xf32>
    "tpu.trace_stop"() : () -> ()
    %33 = vector.shape_cast %32 : vector<1x8x128xf32> to vector<8x128xf32>
    %34 = arith.truncf %33 : vector<8x128xf32> to vector<8x128xbf16>
    %c0_13 = arith.constant 0 : index
    %c0_14 = arith.constant 0 : index
    %35 = vector.load %arg5[%c0_13, %c0_14] : memref<128x128xbf16, #tpu.memory_space<vmem>>, vector<128x128xbf16>
    %cst_15 = arith.constant dense<0.000000e+00> : vector<8x128xf32>
    %36 = tpu.matmul %34, %35, %cst_15 {dimension_numbers = #tpu.dot_dimension_numbers<[1], [0], [0], [1], [0, 0, 1, 1], [], []>} : vector<8x128xbf16>, vector<128x128xbf16>, vector<8x128xf32> -> vector<8x128xf32>
    %c0_16 = arith.constant 0 : index
    %c0_17 = arith.constant 0 : index
    %37 = vector.load %arg6[%c0_16, %c0_17] : memref<1x128xf32, #tpu.memory_space<vmem>>, vector<1x128xf32>
    %38 = vector.broadcast %37 : vector<1x128xf32> to vector<8x128xf32>
    %39 = arith.addf %36, %38 : vector<8x128xf32>
    %40 = arith.addf %1, %39 : vector<8x128xf32>
    %c0_18 = arith.constant 0 : index
    %c0_19 = arith.constant 0 : index
    %41 = vector.load %arg7[%c0_18, %c0_19] : memref<1x128xf32, #tpu.memory_space<vmem>>, vector<1x128xf32>
    %c0_20 = arith.constant 0 : index
    %c0_21 = arith.constant 0 : index
    %42 = vector.load %arg8[%c0_20, %c0_21] : memref<1x128xf32, #tpu.memory_space<vmem>>, vector<1x128xf32>
    %cst_22 = arith.constant dense<0.000000e+00> : vector<8xf32>
    %43 = vector.multi_reduction <add>, %40, %cst_22 [1] : vector<8x128xf32> to vector<8xf32>
    %44 = vector.shape_cast %43 : vector<8xf32> to vector<8x1xf32>
    %cst_23 = arith.constant 1.280000e+02 : f32
    %45 = vector.broadcast %cst_23 : f32 to vector<8x1xf32>
    %46 = arith.divf %44, %45 : vector<8x1xf32>
    %47 = vector.broadcast %46 : vector<8x1xf32> to vector<8x128xf32>
    %48 = arith.subf %40, %47 : vector<8x128xf32>
    %49 = arith.mulf %48, %48 : vector<8x128xf32>
    %cst_24 = arith.constant dense<0.000000e+00> : vector<8xf32>
    %50 = vector.multi_reduction <add>, %49, %cst_24 [1] : vector<8x128xf32> to vector<8xf32>
    %51 = vector.shape_cast %50 : vector<8xf32> to vector<8x1xf32>
    %cst_25 = arith.constant 1.280000e+02 : f32
    %52 = vector.broadcast %cst_25 : f32 to vector<8x1xf32>
    %53 = arith.divf %51, %52 : vector<8x1xf32>
    %54 = vector.broadcast %46 : vector<8x1xf32> to vector<8x128xf32>
    %55 = arith.subf %40, %54 : vector<8x128xf32>
    %cst_26 = arith.constant 9.99999974E-6 : f32
    %56 = vector.broadcast %cst_26 : f32 to vector<8x1xf32>
    %57 = arith.addf %53, %56 : vector<8x1xf32>
    %58 = math.rsqrt %57 : vector<8x1xf32>
    %59 = vector.broadcast %58 : vector<8x1xf32> to vector<8x128xf32>
    %60 = arith.mulf %55, %59 : vector<8x128xf32>
    %61 = vector.broadcast %41 : vector<1x128xf32> to vector<8x128xf32>
    %62 = arith.mulf %60, %61 : vector<8x128xf32>
    %63 = vector.broadcast %42 : vector<1x128xf32> to vector<8x128xf32>
    %64 = arith.addf %62, %63 : vector<8x128xf32>
    %65 = arith.truncf %64 : vector<8x128xf32> to vector<8x128xbf16>
    %c0_27 = arith.constant 0 : index
    %c0_28 = arith.constant 0 : index
    %66 = vector.load %arg9[%c0_27, %c0_28] : memref<128x512xbf16, #tpu.memory_space<vmem>>, vector<128x512xbf16>
    %cst_29 = arith.constant dense<0.000000e+00> : vector<8x512xf32>
    %67 = tpu.matmul %65, %66, %cst_29 {dimension_numbers = #tpu.dot_dimension_numbers<[1], [0], [0], [1], [0, 0, 1, 1], [], []>} : vector<8x128xbf16>, vector<128x512xbf16>, vector<8x512xf32> -> vector<8x512xf32>
    %c0_30 = arith.constant 0 : index
    %c0_31 = arith.constant 0 : index
    %68 = vector.load %arg10[%c0_30, %c0_31] : memref<1x512xf32, #tpu.memory_space<vmem>>, vector<1x512xf32>
    %69 = vector.broadcast %68 : vector<1x512xf32> to vector<8x512xf32>
    %70 = arith.addf %67, %69 : vector<8x512xf32>
    %71 = arith.mulf %70, %70 : vector<8x512xf32>
    %72 = arith.mulf %70, %71 : vector<8x512xf32>
    %cst_32 = arith.constant 4.471500e-02 : f32
    %73 = vector.broadcast %cst_32 : f32 to vector<8x512xf32>
    %74 = arith.mulf %73, %72 : vector<8x512xf32>
    %75 = arith.addf %70, %74 : vector<8x512xf32>
    %cst_33 = arith.constant 0.797884583 : f32
    %76 = vector.broadcast %cst_33 : f32 to vector<8x512xf32>
    %77 = arith.mulf %76, %75 : vector<8x512xf32>
    %78 = math.tanh %77 : vector<8x512xf32>
    %cst_34 = arith.constant 1.000000e+00 : f32
    %79 = vector.broadcast %cst_34 : f32 to vector<8x512xf32>
    %80 = arith.addf %79, %78 : vector<8x512xf32>
    %cst_35 = arith.constant 5.000000e-01 : f32
    %81 = vector.broadcast %cst_35 : f32 to vector<8x512xf32>
    %82 = arith.mulf %81, %80 : vector<8x512xf32>
    %83 = arith.mulf %70, %82 : vector<8x512xf32>
    %84 = arith.truncf %83 : vector<8x512xf32> to vector<8x512xbf16>
    %c0_36 = arith.constant 0 : index
    %c0_37 = arith.constant 0 : index
    %85 = vector.load %arg11[%c0_36, %c0_37] : memref<512x128xbf16, #tpu.memory_space<vmem>>, vector<512x128xbf16>
    %cst_38 = arith.constant dense<0.000000e+00> : vector<8x128xf32>
    %86 = tpu.matmul %84, %85, %cst_38 {dimension_numbers = #tpu.dot_dimension_numbers<[1], [0], [0], [1], [0, 0, 1, 1], [], []>} : vector<8x512xbf16>, vector<512x128xbf16>, vector<8x128xf32> -> vector<8x128xf32>
    %c0_39 = arith.constant 0 : index
    %c0_40 = arith.constant 0 : index
    %87 = vector.load %arg12[%c0_39, %c0_40] : memref<1x128xf32, #tpu.memory_space<vmem>>, vector<1x128xf32>
    %88 = vector.broadcast %87 : vector<1x128xf32> to vector<8x128xf32>
    %89 = arith.addf %86, %88 : vector<8x128xf32>
    %90 = arith.addf %64, %89 : vector<8x128xf32>
    %c0_41 = arith.constant 0 : index
    %c0_42 = arith.constant 0 : index
    %91 = vector.load %arg13[%c0_41, %c0_42] : memref<1x128xf32, #tpu.memory_space<vmem>>, vector<1x128xf32>
    %c0_43 = arith.constant 0 : index
    %c0_44 = arith.constant 0 : index
    %92 = vector.load %arg14[%c0_43, %c0_44] : memref<1x128xf32, #tpu.memory_space<vmem>>, vector<1x128xf32>
    %cst_45 = arith.constant dense<0.000000e+00> : vector<8xf32>
    %93 = vector.multi_reduction <add>, %90, %cst_45 [1] : vector<8x128xf32> to vector<8xf32>
    %94 = vector.shape_cast %93 : vector<8xf32> to vector<8x1xf32>
    %cst_46 = arith.constant 1.280000e+02 : f32
    %95 = vector.broadcast %cst_46 : f32 to vector<8x1xf32>
    %96 = arith.divf %94, %95 : vector<8x1xf32>
    %97 = vector.broadcast %96 : vector<8x1xf32> to vector<8x128xf32>
    %98 = arith.subf %90, %97 : vector<8x128xf32>
    %99 = arith.mulf %98, %98 : vector<8x128xf32>
    %cst_47 = arith.constant dense<0.000000e+00> : vector<8xf32>
    %100 = vector.multi_reduction <add>, %99, %cst_47 [1] : vector<8x128xf32> to vector<8xf32>
    %101 = vector.shape_cast %100 : vector<8xf32> to vector<8x1xf32>
    %cst_48 = arith.constant 1.280000e+02 : f32
    %102 = vector.broadcast %cst_48 : f32 to vector<8x1xf32>
    %103 = arith.divf %101, %102 : vector<8x1xf32>
    %104 = vector.broadcast %96 : vector<8x1xf32> to vector<8x128xf32>
    %105 = arith.subf %90, %104 : vector<8x128xf32>
    %cst_49 = arith.constant 9.99999974E-6 : f32
    %106 = vector.broadcast %cst_49 : f32 to vector<8x1xf32>
    %107 = arith.addf %103, %106 : vector<8x1xf32>
    %108 = math.rsqrt %107 : vector<8x1xf32>
    %109 = vector.broadcast %108 : vector<8x1xf32> to vector<8x128xf32>
    %110 = arith.mulf %105, %109 : vector<8x128xf32>
    %111 = vector.broadcast %91 : vector<1x128xf32> to vector<8x128xf32>
    %112 = arith.mulf %110, %111 : vector<8x128xf32>
    %113 = vector.broadcast %92 : vector<1x128xf32> to vector<8x128xf32>
    %114 = arith.addf %112, %113 : vector<8x128xf32>
    %c0_50 = arith.constant 0 : index
    %c0_51 = arith.constant 0 : index
    %115 = vector.load %arg15[%c0_50, %c0_51] : memref<8x128xf32, #tpu.memory_space<vmem>>, vector<8x128xf32>
    tpu.vector_store %arg15[%c0_50, %c0_51], %114 {strides = array<i32>} : memref<8x128xf32, #tpu.memory_space<vmem>>, vector<8x128xf32>,
    return
  }
  func.func @transform_0(%arg0: i32) -> (i32, i32, i32) {
    %c0_i32 = arith.constant 0 : i32
    %c0_i32_0 = arith.constant 0 : i32
    %c0_i32_1 = arith.constant 0 : i32
    return %arg0, %c0_i32, %c0_i32_0 : i32, i32, i32
  }
  func.func @transform_1(%arg0: i32) -> (i32, i32, i32) {
    %c0_i32 = arith.constant 0 : i32
    %c0_i32_0 = arith.constant 0 : i32
    %c0_i32_1 = arith.constant 0 : i32
    return %arg0, %c0_i32, %c0_i32_0 : i32, i32, i32
  }
  func.func @transform_2(%arg0: i32) -> (i32, i32) {
    %c0_i32 = arith.constant 0 : i32
    %c0_i32_0 = arith.constant 0 : i32
    %c0_i32_1 = arith.constant 0 : i32
    return %c0_i32, %c0_i32_0 : i32, i32
  }
  func.func @transform_3(%arg0: i32) -> (i32, i32) {
    %c0_i32 = arith.constant 0 : i32
    %c0_i32_0 = arith.constant 0 : i32
    %c0_i32_1 = arith.constant 0 : i32
    return %c0_i32, %c0_i32_0 : i32, i32
  }
  func.func @transform_4(%arg0: i32) -> (i32, i32) {
    %c0_i32 = arith.constant 0 : i32
    %c0_i32_0 = arith.constant 0 : i32
    %c0_i32_1 = arith.constant 0 : i32
    return %c0_i32, %c0_i32_0 : i32, i32
  }
  func.func @transform_5(%arg0: i32) -> (i32, i32) {
    %c0_i32 = arith.constant 0 : i32
    %c0_i32_0 = arith.constant 0 : i32
    %c0_i32_1 = arith.constant 0 : i32
    return %c0_i32, %c0_i32_0 : i32, i32
  }
  func.func @transform_6(%arg0: i32) -> (i32, i32) {
    %c0_i32 = arith.constant 0 : i32
    %c0_i32_0 = arith.constant 0 : i32
    %c0_i32_1 = arith.constant 0 : i32
    return %c0_i32, %c0_i32_0 : i32, i32
  }
  func.func @transform_7(%arg0: i32) -> (i32, i32) {
    %c0_i32 = arith.constant 0 : i32
    %c0_i32_0 = arith.constant 0 : i32
    %c0_i32_1 = arith.constant 0 : i32
    return %c0_i32, %c0_i32_0 : i32, i32
  }
  func.func @transform_8(%arg0: i32) -> (i32, i32) {
    %c0_i32 = arith.constant 0 : i32
    %c0_i32_0 = arith.constant 0 : i32
    %c0_i32_1 = arith.constant 0 : i32
    return %c0_i32, %c0_i32_0 : i32, i32
  }
  func.func @transform_9(%arg0: i32) -> (i32, i32) {
    %c0_i32 = arith.constant 0 : i32
    %c0_i32_0 = arith.constant 0 : i32
    %c0_i32_1 = arith.constant 0 : i32
    return %c0_i32, %c0_i32_0 : i32, i32
  }
  func.func @transform_10(%arg0: i32) -> (i32, i32) {
    %c0_i32 = arith.constant 0 : i32
    %c0_i32_0 = arith.constant 0 : i32
    %c0_i32_1 = arith.constant 0 : i32
    return %c0_i32, %c0_i32_0 : i32, i32
  }
  func.func @transform_11(%arg0: i32) -> (i32, i32) {
    %c0_i32 = arith.constant 0 : i32
    %c0_i32_0 = arith.constant 0 : i32
    %c0_i32_1 = arith.constant 0 : i32
    return %c0_i32, %c0_i32_0 : i32, i32
  }
  func.func @transform_12(%arg0: i32) -> (i32, i32) {
    %c0_i32 = arith.constant 0 : i32
    %c0_i32_0 = arith.constant 0 : i32
    %c0_i32_1 = arith.constant 0 : i32
    return %c0_i32, %c0_i32_0 : i32, i32
  }
  func.func @transform_13(%arg0: i32) -> (i32, i32) {
    %c0_i32 = arith.constant 0 : i32
    %c0_i32_0 = arith.constant 0 : i32
    %c0_i32_1 = arith.constant 0 : i32
    return %c0_i32, %c0_i32_0 : i32, i32
  }
  func.func @transform_14(%arg0: i32) -> (i32, i32) {
    %c0_i32 = arith.constant 0 : i32
    %c0_i32_0 = arith.constant 0 : i32
    return %arg0, %c0_i32 : i32, i32
  }
}

</mosaic_0001>

<llo_original>
// kernel: tpu_custom_call.1
$region0: #{tpu_custom_call.1}
  #allocation0 [shape = 'u32[]', space=smem, size = 0x4, offset = 0x4, fixed_abs, tag = 'smem constant byte address 0x4 - core index']
  #allocation1 [shape = 'u32[144,128]{1,0:T(1,128)}', space=vmem, size = 0x12000, scoped, tag = 'internal scratch']
  %s0 = inlined_call_operand.hbm [shape: f32[2,8,128], index: 0, kind: input, shape index: {}]
  %s1 = inlined_call_operand.hbm [shape: f32[2,1,8], index: 1, kind: input, shape index: {}]
  %s2 = inlined_call_operand.hbm [shape: bf16[128,384], index: 2, kind: input, shape index: {}]
  %s3 = inlined_call_operand.vmem [shape: f32[1,384], index: 3, kind: input, shape index: {}]
  %s4 = inlined_call_operand.hbm [shape: bf16[128,128], index: 4, kind: input, shape index: {}]
  %s5 = inlined_call_operand.vmem [shape: f32[1,128], index: 5, kind: input, shape index: {}]
  %s6 = inlined_call_operand.vmem [shape: f32[1,128], index: 6, kind: input, shape index: {}]
  %s7 = inlined_call_operand.vmem [shape: f32[1,128], index: 7, kind: input, shape index: {}]
  %s8 = inlined_call_operand.hbm [shape: bf16[128,512], index: 8, kind: input, shape index: {}]
  %s9 = inlined_call_operand.vmem [shape: f32[1,512], index: 9, kind: input, shape index: {}]
  %s10 = inlined_call_operand.hbm [shape: bf16[512,128], index: 10, kind: input, shape index: {}]
  %s11 = inlined_call_operand.vmem [shape: f32[1,128], index: 11, kind: input, shape index: {}]
  %s12 = inlined_call_operand.vmem [shape: f32[1,128], index: 12, kind: input, shape index: {}]
  %s13 = inlined_call_operand.vmem [shape: f32[1,128], index: 13, kind: input, shape index: {}]
  %s14 = inlined_call_operand.hbm [shape: f32[16,128], index: 14, kind: output, shape index: {}]
  %s15 = sld [smem:[#allocation0]]
  $region113: #{tpu_custom_call.1} parent=0
    _
  %s17 = ssub.s32 1, %s15
  %s18 = scalar_select 0, %s17, %s15
  $region1: #{tpu_custom_call.1} parent=0
    #allocation2 [shape = 'u8[8192]{0}', space=vmem, size = 0x2000, scoped, tag = 'input window, operand 0']
    #allocation3 [shape = 's32[2]{0}', space=sflag, size = 0x8, scoped, tag = 'scoped memory for tpu_custom_call.1']
    #allocation4 [shape = 's32[2]{0}', space=sflag, size = 0x8, scoped, tag = 'scoped memory for tpu_custom_call.1']
    #allocation5 [shape = 'u8[1024]{0}', space=vmem, size = 0x400, scoped, tag = 'input window, operand 1']
    #allocation6 [shape = 's32[2]{0}', space=sflag, size = 0x8, scoped, tag = 'scoped memory for tpu_custom_call.1']
    #allocation7 [shape = 'u8[98304]{0}', space=vmem, size = 0x18000, scoped, tag = 'input window, operand 2, single buffered']
    #allocation8 [shape = 'u8[32768]{0}', space=vmem, size = 0x8000, scoped, tag = 'input window, operand 4, single buffered']
    #allocation9 [shape = 's32[1]{0}', space=sflag, size = 0x4, scoped, tag = 'scoped memory for tpu_custom_call.1']
    #allocation10 [shape = 'u8[131072]{0}', space=vmem, size = 0x20000, scoped, tag = 'input window, operand 8, single buffered']
    #allocation11 [shape = 'u8[131072]{0}', space=vmem, size = 0x20000, scoped, tag = 'input window, operand 10, single buffered']
    #allocation12 [shape = 's32[1]{0}', space=sflag, size = 0x4, scoped, tag = 'scoped memory for tpu_custom_call.1']
    #allocation13 [shape = 'u8[8192]{0}', space=vmem, size = 0x2000, scoped, tag = 'output window, operand 0']
    %19 = vsyncpa [#allocation3], 0
    %s20 = scalar_lea.sflag [#allocation3], 1
    %21 = vsyncpa %s20, 0
    %22 = vsyncpa [#allocation6], 0
    %s23 = scalar_lea.sflag [#allocation6], 1
    %24 = vsyncpa %s23, 0
    %25 = vsyncpa [#allocation9], 0
    %26 = vsyncpa [#allocation12], 0
    %27 = vsyncpa [#allocation4], 0
    %s28 = scalar_lea.sflag [#allocation4], 1
    %29 = vsyncpa %s28, 0
    loop: start=0, step=1, limit=4
    $region2: #{tpu_custom_call.1} parent=1 // loop_pre_header
      _
    $region3: #{tpu_custom_call.1} parent=1 // loop_header
      %s31 = sphi 0, %s35
      %p32 = scmp.ge.s32.totalorder %s31, 4
      %s41 = sphi 0, %s43
      %s44 = sphi 0, %s41
      %s45 = sphi 0, %s44
      %s61 = sphi 0, %s45
      %s67 = sphi 0, %s69
      %s70 = sphi 0, %s67
      %s71 = sphi 0, %s70
      %s87 = sphi 0, %s71
      %s91 = sphi 0, %s91
      %s93 = sphi 0, %s91
      %s94 = sphi 0, %s93
      %s108 = sphi 0, %s94
      %s112 = sphi 0, %s112
      %s114 = sphi 0, %s112
      %s115 = sphi 0, %s114
      %s129 = sphi 0, %s115
      %s133 = sphi 0, %s133
      %s135 = sphi 0, %s133
      %s136 = sphi 0, %s135
      %s150 = sphi 0, %s136
      %s154 = sphi 0, %s154
      %s156 = sphi 0, %s154
      %s157 = sphi 0, %s156
      %s171 = sphi 0, %s157
      %s175 = sphi 0, %s175
      %s177 = sphi 0, %s175
      %s178 = sphi 0, %s177
      %s192 = sphi 0, %s178
      %s196 = sphi 0, %s196
      %s198 = sphi 0, %s196
      %s199 = sphi 0, %s198
      %s213 = sphi 0, %s199
      %s217 = sphi 0, %s217
      %s219 = sphi 0, %s217
      %s220 = sphi 0, %s219
      %s234 = sphi 0, %s220
      %s238 = sphi 0, %s238
      %s240 = sphi 0, %s238
      %s241 = sphi 0, %s240
      %s255 = sphi 0, %s241
      %s259 = sphi 0, %s259
      %s261 = sphi 0, %s259
      %s262 = sphi 0, %s261
      %s276 = sphi 0, %s262
      %s280 = sphi 0, %s280
      %s282 = sphi 0, %s280
      %s283 = sphi 0, %s282
      %s297 = sphi 0, %s283
      %s301 = sphi 0, %s301
      %s303 = sphi 0, %s301
      %s304 = sphi 0, %s303
      %s318 = sphi 0, %s304
      %s322 = sphi 0, %s322
      %s324 = sphi 0, %s322
      %s325 = sphi 0, %s324
      %s339 = sphi 0, %s325
      %s345 = sphi 0, %s347
      %s348 = sphi 0, %s345
      %s349 = sphi 0, %s348
      %s365 = sphi 0, %s349
    $region4: #{tpu_custom_call.1} parent=1 // loop_header_branch
      %34 = sbr.rel (%p32) target = $region8
    $region5: #{tpu_custom_call.1} parent=1 // loop_body
      %s36 = ssub.s32 %s31, 1
      %s37 = ssub.s32 %s31, 2
      %s38 = sadd.s32 %s31, 1
      %s39 = ssub.s32 %s31, %s38
      %p40 = scmp.eq.s32.totalorder %s39, 0
      %s42 = sadd.s32 %s41, 1
      %s43 = scalar_select %p40, %s41, %s42
      %p46 = pneg %p40
      %p47 = scmp.eq.s32.totalorder %s31, 1
      %p48 = por %p46, %p47
      %p49 = scmp.ne.s32.totalorder %s41, %s44
      %p50 = scmp.eq.s32.totalorder %s31, 0
      %p51 = por %p49, %p50
      %p52 = scmp.ne.s32.totalorder %s41, %s44
      %p53 = scmp.eq.s32.totalorder %s36, 1
      %p54 = por %p52, %p53
      %p55 = scmp.ne.s32.totalorder %s44, %s45
      %p56 = scmp.eq.s32.totalorder %s36, 0
      %p57 = por %p55, %p56
      %p58 = scmp.ne.s32.totalorder %s44, %s45
      %p59 = scmp.eq.s32.totalorder %s37, 1
      %p60 = por %p58, %p59
      %p62 = scmp.ne.s32.totalorder %s45, %s61
      %p63 = scmp.eq.s32.totalorder %s37, 0
      %p64 = por %p62, %p63
      %s65 = ssub.s32 %s31, %s38
      %p66 = scmp.eq.s32.totalorder %s65, 0
      %s68 = sadd.s32 %s67, 1
      %s69 = scalar_select %p66, %s67, %s68
      %p72 = pneg %p66
      %p73 = scmp.eq.s32.totalorder %s31, 1
      %p74 = por %p72, %p73
      %p75 = scmp.ne.s32.totalorder %s67, %s70
      %p76 = scmp.eq.s32.totalorder %s31, 0
      %p77 = por %p75, %p76
      %p78 = scmp.ne.s32.totalorder %s67, %s70
      %p79 = scmp.eq.s32.totalorder %s36, 1
      %p80 = por %p78, %p79
      %p81 = scmp.ne.s32.totalorder %s70, %s71
      %p82 = scmp.eq.s32.totalorder %s36, 0
      %p83 = por %p81, %p82
      %p84 = scmp.ne.s32.totalorder %s70, %s71
      %p85 = scmp.eq.s32.totalorder %s37, 1
      %p86 = por %p84, %p85
      %p88 = scmp.ne.s32.totalorder %s71, %s87
      %p89 = scmp.eq.s32.totalorder %s37, 0
      %p90 = por %p88, %p89
      %s92 = sadd.s32 %s91, 1
      %p95 = scmp.eq.s32.totalorder %s31, 1
      %p96 = scmp.ne.s32.totalorder %s91, %s93
      %p97 = scmp.eq.s32.totalorder %s31, 0
      %p98 = por %p96, %p97
      %p99 = scmp.ne.s32.totalorder %s91, %s93
      %p100 = scmp.eq.s32.totalorder %s36, 1
      %p101 = por %p99, %p100
      %p102 = scmp.ne.s32.totalorder %s93, %s94
      %p103 = scmp.eq.s32.totalorder %s36, 0
      %p104 = por %p102, %p103
      %p105 = scmp.ne.s32.totalorder %s93, %s94
      %p106 = scmp.eq.s32.totalorder %s37, 1
      %p107 = por %p105, %p106
      %p109 = scmp.ne.s32.totalorder %s94, %s108
      %p110 = scmp.eq.s32.totalorder %s37, 0
      %p111 = por %p109, %p110
      %s113 = sadd.s32 %s112, 1
      %p116 = scmp.eq.s32.totalorder %s31, 1
      %p117 = scmp.ne.s32.totalorder %s112, %s114
      %p118 = scmp.eq.s32.totalorder %s31, 0
      %p119 = por %p117, %p118
      %p120 = scmp.ne.s32.totalorder %s112, %s114
      %p121 = scmp.eq.s32.totalorder %s36, 1
      %p122 = por %p120, %p121
      %p123 = scmp.ne.s32.totalorder %s114, %s115
      %p124 = scmp.eq.s32.totalorder %s36, 0
      %p125 = por %p123, %p124
      %p126 = scmp.ne.s32.totalorder %s114, %s115
      %p127 = scmp.eq.s32.totalorder %s37, 1
      %p128 = por %p126, %p127
      %p130 = scmp.ne.s32.totalorder %s115, %s129
      %p131 = scmp.eq.s32.totalorder %s37, 0
      %p132 = por %p130, %p131
      %s134 = sadd.s32 %s133, 1
      %p137 = scmp.eq.s32.totalorder %s31, 1
      %p138 = scmp.ne.s32.totalorder %s133, %s135
      %p139 = scmp.eq.s32.totalorder %s31, 0
      %p140 = por %p138, %p139
      %p141 = scmp.ne.s32.totalorder %s133, %s135
      %p142 = scmp.eq.s32.totalorder %s36, 1
      %p143 = por %p141, %p142
      %p144 = scmp.ne.s32.totalorder %s135, %s136
      %p145 = scmp.eq.s32.totalorder %s36, 0
      %p146 = por %p144, %p145
      %p147 = scmp.ne.s32.totalorder %s135, %s136
      %p148 = scmp.eq.s32.totalorder %s37, 1
      %p149 = por %p147, %p148
      %p151 = scmp.ne.s32.totalorder %s136, %s150
      %p152 = scmp.eq.s32.totalorder %s37, 0
      %p153 = por %p151, %p152
      %s155 = sadd.s32 %s154, 1
      %p158 = scmp.eq.s32.totalorder %s31, 1
      %p159 = scmp.ne.s32.totalorder %s154, %s156
      %p160 = scmp.eq.s32.totalorder %s31, 0
      %p161 = por %p159, %p160
      %p162 = scmp.ne.s32.totalorder %s154, %s156
      %p163 = scmp.eq.s32.totalorder %s36, 1
      %p164 = por %p162, %p163
      %p165 = scmp.ne.s32.totalorder %s156, %s157
      %p166 = scmp.eq.s32.totalorder %s36, 0
      %p167 = por %p165, %p166
      %p168 = scmp.ne.s32.totalorder %s156, %s157
      %p169 = scmp.eq.s32.totalorder %s37, 1
      %p170 = por %p168, %p169
      %p172 = scmp.ne.s32.totalorder %s157, %s171
      %p173 = scmp.eq.s32.totalorder %s37, 0
      %p174 = por %p172, %p173
      %s176 = sadd.s32 %s175, 1
      %p179 = scmp.eq.s32.totalorder %s31, 1
      %p180 = scmp.ne.s32.totalorder %s175, %s177
      %p181 = scmp.eq.s32.totalorder %s31, 0
      %p182 = por %p180, %p181
      %p183 = scmp.ne.s32.totalorder %s175, %s177
      %p184 = scmp.eq.s32.totalorder %s36, 1
      %p185 = por %p183, %p184
      %p186 = scmp.ne.s32.totalorder %s177, %s178
      %p187 = scmp.eq.s32.totalorder %s36, 0
      %p188 = por %p186, %p187
      %p189 = scmp.ne.s32.totalorder %s177, %s178
      %p190 = scmp.eq.s32.totalorder %s37, 1
      %p191 = por %p189, %p190
      %p193 = scmp.ne.s32.totalorder %s178, %s192
      %p194 = scmp.eq.s32.totalorder %s37, 0
      %p195 = por %p193, %p194
      %s197 = sadd.s32 %s196, 1
      %p200 = scmp.eq.s32.totalorder %s31, 1
      %p201 = scmp.ne.s32.totalorder %s196, %s198
      %p202 = scmp.eq.s32.totalorder %s31, 0
      %p203 = por %p201, %p202
      %p204 = scmp.ne.s32.totalorder %s196, %s198
      %p205 = scmp.eq.s32.totalorder %s36, 1
      %p206 = por %p204, %p205
      %p207 = scmp.ne.s32.totalorder %s198, %s199
      %p208 = scmp.eq.s32.totalorder %s36, 0
      %p209 = por %p207, %p208
      %p210 = scmp.ne.s32.totalorder %s198, %s199
      %p211 = scmp.eq.s32.totalorder %s37, 1
      %p212 = por %p210, %p211
      %p214 = scmp.ne.s32.totalorder %s199, %s213
      %p215 = scmp.eq.s32.totalorder %s37, 0
      %p216 = por %p214, %p215
      %s218 = sadd.s32 %s217, 1
      %p221 = scmp.eq.s32.totalorder %s31, 1
      %p222 = scmp.ne.s32.totalorder %s217, %s219
      %p223 = scmp.eq.s32.totalorder %s31, 0
      %p224 = por %p222, %p223
      %p225 = scmp.ne.s32.totalorder %s217, %s219
      %p226 = scmp.eq.s32.totalorder %s36, 1
      %p227 = por %p225, %p226
      %p228 = scmp.ne.s32.totalorder %s219, %s220
      %p229 = scmp.eq.s32.totalorder %s36, 0
      %p230 = por %p228, %p229
      %p231 = scmp.ne.s32.totalorder %s219, %s220
      %p232 = scmp.eq.s32.totalorder %s37, 1
      %p233 = por %p231, %p232
      %p235 = scmp.ne.s32.totalorder %s220, %s234
      %p236 = scmp.eq.s32.totalorder %s37, 0
      %p237 = por %p235, %p236
      %s239 = sadd.s32 %s238, 1
      %p242 = scmp.eq.s32.totalorder %s31, 1
      %p243 = scmp.ne.s32.totalorder %s238, %s240
      %p244 = scmp.eq.s32.totalorder %s31, 0
      %p245 = por %p243, %p244
      %p246 = scmp.ne.s32.totalorder %s238, %s240
      %p247 = scmp.eq.s32.totalorder %s36, 1
      %p248 = por %p246, %p247
      %p249 = scmp.ne.s32.totalorder %s240, %s241
      %p250 = scmp.eq.s32.totalorder %s36, 0
      %p251 = por %p249, %p250
      %p252 = scmp.ne.s32.totalorder %s240, %s241
      %p253 = scmp.eq.s32.totalorder %s37, 1
      %p254 = por %p252, %p253
      %p256 = scmp.ne.s32.totalorder %s241, %s255
      %p257 = scmp.eq.s32.totalorder %s37, 0
      %p258 = por %p256, %p257
      %s260 = sadd.s32 %s259, 1
      %p263 = scmp.eq.s32.totalorder %s31, 1
      %p264 = scmp.ne.s32.totalorder %s259, %s261
      %p265 = scmp.eq.s32.totalorder %s31, 0
      %p266 = por %p264, %p265
      %p267 = scmp.ne.s32.totalorder %s259, %s261
      %p268 = scmp.eq.s32.totalorder %s36, 1
      %p269 = por %p267, %p268
      %p270 = scmp.ne.s32.totalorder %s261, %s262
      %p271 = scmp.eq.s32.totalorder %s36, 0
      %p272 = por %p270, %p271
      %p273 = scmp.ne.s32.totalorder %s261, %s262
      %p274 = scmp.eq.s32.totalorder %s37, 1
      %p275 = por %p273, %p274
      %p277 = scmp.ne.s32.totalorder %s262, %s276
      %p278 = scmp.eq.s32.totalorder %s37, 0
      %p279 = por %p277, %p278
      %s281 = sadd.s32 %s280, 1
      %p284 = scmp.eq.s32.totalorder %s31, 1
      %p285 = scmp.ne.s32.totalorder %s280, %s282
      %p286 = scmp.eq.s32.totalorder %s31, 0
      %p287 = por %p285, %p286
      %p288 = scmp.ne.s32.totalorder %s280, %s282
      %p289 = scmp.eq.s32.totalorder %s36, 1
      %p290 = por %p288, %p289
      %p291 = scmp.ne.s32.totalorder %s282, %s283
      %p292 = scmp.eq.s32.totalorder %s36, 0
      %p293 = por %p291, %p292
      %p294 = scmp.ne.s32.totalorder %s282, %s283
      %p295 = scmp.eq.s32.totalorder %s37, 1
      %p296 = por %p294, %p295
      %p298 = scmp.ne.s32.totalorder %s283, %s297
      %p299 = scmp.eq.s32.totalorder %s37, 0
      %p300 = por %p298, %p299
      %s302 = sadd.s32 %s301, 1
      %p305 = scmp.eq.s32.totalorder %s31, 1
      %p306 = scmp.ne.s32.totalorder %s301, %s303
      %p307 = scmp.eq.s32.totalorder %s31, 0
      %p308 = por %p306, %p307
      %p309 = scmp.ne.s32.totalorder %s301, %s303
      %p310 = scmp.eq.s32.totalorder %s36, 1
      %p311 = por %p309, %p310
      %p312 = scmp.ne.s32.totalorder %s303, %s304
      %p313 = scmp.eq.s32.totalorder %s36, 0
      %p314 = por %p312, %p313
      %p315 = scmp.ne.s32.totalorder %s303, %s304
      %p316 = scmp.eq.s32.totalorder %s37, 1
      %p317 = por %p315, %p316
      %p319 = scmp.ne.s32.totalorder %s304, %s318
      %p320 = scmp.eq.s32.totalorder %s37, 0
      %p321 = por %p319, %p320
      %s323 = sadd.s32 %s322, 1
      %p326 = scmp.eq.s32.totalorder %s31, 1
      %p327 = scmp.ne.s32.totalorder %s322, %s324
      %p328 = scmp.eq.s32.totalorder %s31, 0
      %p329 = por %p327, %p328
      %p330 = scmp.ne.s32.totalorder %s322, %s324
      %p331 = scmp.eq.s32.totalorder %s36, 1
      %p332 = por %p330, %p331
      %p333 = scmp.ne.s32.totalorder %s324, %s325
      %p334 = scmp.eq.s32.totalorder %s36, 0
      %p335 = por %p333, %p334
      %p336 = scmp.ne.s32.totalorder %s324, %s325
      %p337 = scmp.eq.s32.totalorder %s37, 1
      %p338 = por %p336, %p337
      %p340 = scmp.ne.s32.totalorder %s325, %s339
      %p341 = scmp.eq.s32.totalorder %s37, 0
      %p342 = por %p340, %p341
      %s343 = ssub.s32 %s31, %s38
      %p344 = scmp.eq.s32.totalorder %s343, 0
      %s346 = sadd.s32 %s345, 1
      %s347 = scalar_select %p344, %s345, %s346
      %p350 = pneg %p344
      %p351 = scmp.eq.s32.totalorder %s31, 1
      %p352 = por %p350, %p351
      %p353 = scmp.ne.s32.totalorder %s345, %s348
      %p354 = scmp.eq.s32.totalorder %s31, 0
      %p355 = por %p353, %p354
      %p356 = scmp.ne.s32.totalorder %s345, %s348
      %p357 = scmp.eq.s32.totalorder %s36, 1
      %p358 = por %p356, %p357
      %p359 = scmp.ne.s32.totalorder %s348, %s349
      %p360 = scmp.eq.s32.totalorder %s36, 0
      %p361 = por %p359, %p360
      %p362 = scmp.ne.s32.totalorder %s348, %s349
      %p363 = scmp.eq.s32.totalorder %s37, 1
      %p364 = por %p362, %p363
      %p366 = scmp.ne.s32.totalorder %s349, %s365
      %p367 = scmp.eq.s32.totalorder %s37, 0
      %p368 = por %p366, %p367
      %p369 = scmp.le.s32.totalorder 1, %s31
      %p370 = scmp.lt.s32.totalorder %s31, 3
      %p371 = pnand %p369, %p370
      %p372 = pneg %p371
      // Predicated region
      $region9: #{tpu_custom_call.1} parent=5 // pred_check
        _
      $region10: #{tpu_custom_call.1} parent=5 // pred_check_branch
        %374 = sbr.rel (%p371) target = $region12
      $region11: #{tpu_custom_call.1} parent=5 // pred_region
        %s375 = ssub.s32 %s31, 1
        // Predicated region
        $region13: #{tpu_custom_call.1} parent=11 // pred_check
          %p376 = pneg %p104
        $region14: #{tpu_custom_call.1} parent=11 // pred_check_branch
          %378 = sbr.rel (%p376) target = $region16
        $region15: #{tpu_custom_call.1} parent=11 // pred_region
          %s380 = ssub.s32 3072, 3072
          %381 = vsyncadd [#allocation6], %s380
          %s382 = sshll.u32 [#allocation7], 4
          %s383 = int_to_ptr.vmem [resolvable:$true] %s382
          %388 = dma.hbm_to_vmem [thread:$0]  %s2, 3072, %s383, [#allocation6], 192, 192, 12
        $region16: #{tpu_custom_call.1} parent=11 // pred_fallthru
          _
        // Predicated region
        $region17: #{tpu_custom_call.1} parent=11 // pred_check
          %p389 = pneg %p125
        $region18: #{tpu_custom_call.1} parent=11 // pred_check_branch
          %391 = sbr.rel (%p389) target = $region20
        $region19: #{tpu_custom_call.1} parent=11 // pred_region
          _
        $region20: #{tpu_custom_call.1} parent=11 // pred_fallthru
          _
        // Predicated region
        $region21: #{tpu_custom_call.1} parent=11 // pred_check
          %p392 = pneg %p146
        $region22: #{tpu_custom_call.1} parent=11 // pred_check_branch
          %394 = sbr.rel (%p392) target = $region24
        $region23: #{tpu_custom_call.1} parent=11 // pred_region
          %s396 = ssub.s32 1024, 1024
          %397 = vsyncadd [#allocation9], %s396
          %s398 = sshll.u32 [#allocation8], 4
          %s399 = int_to_ptr.vmem [resolvable:$true] %s398
          %404 = dma.hbm_to_vmem [thread:$0]  %s4, 1024, %s399, [#allocation9], 64, 64, 4
        $region24: #{tpu_custom_call.1} parent=11 // pred_fallthru
          _
        // Predicated region
        $region25: #{tpu_custom_call.1} parent=11 // pred_check
          %p405 = pneg %p167
        $region26: #{tpu_custom_call.1} parent=11 // pred_check_branch
          %407 = sbr.rel (%p405) target = $region28
        $region27: #{tpu_custom_call.1} parent=11 // pred_region
          _
        $region28: #{tpu_custom_call.1} parent=11 // pred_fallthru
          _
        // Predicated region
        $region29: #{tpu_custom_call.1} parent=11 // pred_check
          %p408 = pneg %p188
        $region30: #{tpu_custom_call.1} parent=11 // pred_check_branch
          %410 = sbr.rel (%p408) target = $region32
        $region31: #{tpu_custom_call.1} parent=11 // pred_region
          _
        $region32: #{tpu_custom_call.1} parent=11 // pred_fallthru
          _
        // Predicated region
        $region33: #{tpu_custom_call.1} parent=11 // pred_check
          %p411 = pneg %p209
        $region34: #{tpu_custom_call.1} parent=11 // pred_check_branch
          %413 = sbr.rel (%p411) target = $region36
        $region35: #{tpu_custom_call.1} parent=11 // pred_region
          _
        $region36: #{tpu_custom_call.1} parent=11 // pred_fallthru
          _
        // Predicated region
        $region37: #{tpu_custom_call.1} parent=11 // pred_check
          %p414 = pneg %p230
        $region38: #{tpu_custom_call.1} parent=11 // pred_check_branch
          %416 = sbr.rel (%p414) target = $region40
        $region39: #{tpu_custom_call.1} parent=11 // pred_region
          %s418 = ssub.s32 4096, 4096
          %419 = vsyncadd [#allocation9], %s418
          %s420 = sshll.u32 [#allocation10], 4
          %s421 = int_to_ptr.vmem [resolvable:$true] %s420
          %426 = dma.hbm_to_vmem [thread:$0]  %s8, 4096, %s421, [#allocation9], 256, 256, 16
        $region40: #{tpu_custom_call.1} parent=11 // pred_fallthru
          _
        // Predicated region
        $region41: #{tpu_custom_call.1} parent=11 // pred_check
          %p427 = pneg %p251
        $region42: #{tpu_custom_call.1} parent=11 // pred_check_branch
          %429 = sbr.rel (%p427) target = $region44
        $region43: #{tpu_custom_call.1} parent=11 // pred_region
          _
        $region44: #{tpu_custom_call.1} parent=11 // pred_fallthru
          _
        // Predicated region
        $region45: #{tpu_custom_call.1} parent=11 // pred_check
          %p430 = pneg %p272
        $region46: #{tpu_custom_call.1} parent=11 // pred_check_branch
          %432 = sbr.rel (%p430) target = $region48
        $region47: #{tpu_custom_call.1} parent=11 // pred_region
          %s434 = ssub.s32 4096, 4096
          %435 = vsyncadd [#allocation12], %s434
          %s436 = sshll.u32 [#allocation11], 4
          %s437 = int_to_ptr.vmem [resolvable:$true] %s436
          %442 = dma.hbm_to_vmem [thread:$0]  %s10, 4096, %s437, [#allocation12], 64, 64, 4
        $region48: #{tpu_custom_call.1} parent=11 // pred_fallthru
          _
        // Predicated region
        $region49: #{tpu_custom_call.1} parent=11 // pred_check
          %p443 = pneg %p293
        $region50: #{tpu_custom_call.1} parent=11 // pred_check_branch
          %445 = sbr.rel (%p443) target = $region52
        $region51: #{tpu_custom_call.1} parent=11 // pred_region
          _
        $region52: #{tpu_custom_call.1} parent=11 // pred_fallthru
          _
        // Predicated region
        $region53: #{tpu_custom_call.1} parent=11 // pred_check
          %p446 = pneg %p314
        $region54: #{tpu_custom_call.1} parent=11 // pred_check_branch
          %448 = sbr.rel (%p446) target = $region56
        $region55: #{tpu_custom_call.1} parent=11 // pred_region
          _
        $region56: #{tpu_custom_call.1} parent=11 // pred_fallthru
          _
        // Predicated region
        $region57: #{tpu_custom_call.1} parent=11 // pred_check
          %p449 = pneg %p335
        $region58: #{tpu_custom_call.1} parent=11 // pred_check_branch
          %451 = sbr.rel (%p449) target = $region60
        $region59: #{tpu_custom_call.1} parent=11 // pred_region
          _
        $region60: #{tpu_custom_call.1} parent=11 // pred_fallthru
          _
      $region12: #{tpu_custom_call.1} parent=5 // pred_fallthru
        _
      %p452 = scmp.lt.s32.totalorder %s31, 2
      // Predicated region
      $region61: #{tpu_custom_call.1} parent=5 // pred_check
        %p453 = pneg %p452
      $region62: #{tpu_custom_call.1} parent=5 // pred_check_branch
        %455 = sbr.rel (%p453) target = $region64
      $region63: #{tpu_custom_call.1} parent=5 // pred_region
        // Predicated region
        $region65: #{tpu_custom_call.1} parent=63 // pred_check
          %p456 = pneg %p51
        $region66: #{tpu_custom_call.1} parent=63 // pred_check_branch
          %458 = sbr.rel (%p456) target = $region68
        $region67: #{tpu_custom_call.1} parent=63 // pred_region
          %s459 = sand.u32 %s41, 1
          %s460 = scalar_lea.sflag [#allocation3], %s459
          %s461 = sand.u32 %s41, 1
          %s462 = smul.addr %s461, 8
          %s463 = scalar_lea.vmem [#allocation2], %s462
          %s465 = ssub.s32 128, 128
          %466 = vsyncadd %s460, %s465
          %s467 = smul.addr %s31, 128
          %s468 = scalar_lea.hbm %s0, %s467
          %s470 = sshll.u32 %s463, 4
          %s471 = int_to_ptr.vmem [resolvable:$true] %s470
          %473 = dma.hbm_to_vmem [thread:$0]  %s468, 128, %s471, %s460
        $region68: #{tpu_custom_call.1} parent=63 // pred_fallthru
          _
        // Predicated region
        $region69: #{tpu_custom_call.1} parent=63 // pred_check
          %p474 = pneg %p77
        $region70: #{tpu_custom_call.1} parent=63 // pred_check_branch
          %476 = sbr.rel (%p474) target = $region72
        $region71: #{tpu_custom_call.1} parent=63 // pred_region
          %s477 = sand.u32 %s31, 1
          %s478 = scalar_lea.sflag [#allocation6], %s477
          %s479 = sand.u32 %s67, 1
          %s480 = scalar_lea.vmem [#allocation5], %s479
          %s482 = ssub.s32 16, 16
          %483 = vsyncadd %s478, %s482
          %s484 = smul.addr %s31, 16
          %s485 = scalar_lea.hbm %s1, %s484
          %s487 = sshll.u32 %s480, 4
          %s488 = int_to_ptr.vmem [resolvable:$true] %s487
          %490 = dma.hbm_to_vmem [thread:$0]  %s485, 16, %s488, %s478
        $region72: #{tpu_custom_call.1} parent=63 // pred_fallthru
          _
      $region64: #{tpu_custom_call.1} parent=5 // pred_fallthru
        _
      %p491 = scmp.le.s32.totalorder 1, %s31
      %p492 = scmp.lt.s32.totalorder %s31, 3
      %p493 = pnand %p491, %p492
      %p494 = pneg %p493
      // Predicated region
      $region73: #{tpu_custom_call.1} parent=5 // pred_check
        _
      $region74: #{tpu_custom_call.1} parent=5 // pred_check_branch
        %496 = sbr.rel (%p493) target = $region76
      $region75: #{tpu_custom_call.1} parent=5 // pred_region
        %s497 = ssub.s32 %s31, 1
        %s498 = sand.u32 %s44, 1
        %s499 = scalar_lea.sflag [#allocation3], %s498
        %s500 = sand.u32 %s44, 1
        %s501 = smul.addr %s500, 8
        %s502 = scalar_lea.vmem [#allocation2], %s501
        // Predicated region
        $region77: #{tpu_custom_call.1} parent=75 // pred_check
          %p503 = pneg %p57
        $region78: #{tpu_custom_call.1} parent=75 // pred_check_branch
          %505 = sbr.rel (%p503) target = $region80
        $region79: #{tpu_custom_call.1} parent=75 // pred_region
          %506 = dma.done %s499, 128
        $region80: #{tpu_custom_call.1} parent=75 // pred_fallthru
          _
        %s507 = sand.u32 %s36, 1
        %s508 = scalar_lea.sflag [#allocation6], %s507
        %s509 = sand.u32 %s70, 1
        %s510 = scalar_lea.vmem [#allocation5], %s509
        // Predicated region
        $region81: #{tpu_custom_call.1} parent=75 // pred_check
          %p511 = pneg %p83
        $region82: #{tpu_custom_call.1} parent=75 // pred_check_branch
          %513 = sbr.rel (%p511) target = $region84
        $region83: #{tpu_custom_call.1} parent=75 // pred_region
          %514 = dma.done %s508, 16
        $region84: #{tpu_custom_call.1} parent=75 // pred_fallthru
          _
        // Predicated region
        $region85: #{tpu_custom_call.1} parent=75 // pred_check
          %p515 = pneg %p104
        $region86: #{tpu_custom_call.1} parent=75 // pred_check_branch
          %517 = sbr.rel (%p515) target = $region88
        $region87: #{tpu_custom_call.1} parent=75 // pred_region
          %518 = dma.done [#allocation6], 3072
        $region88: #{tpu_custom_call.1} parent=75 // pred_fallthru
          _
        // Predicated region
        $region89: #{tpu_custom_call.1} parent=75 // pred_check
          %p519 = pneg %p146
        $region90: #{tpu_custom_call.1} parent=75 // pred_check_branch
          %521 = sbr.rel (%p519) target = $region92
        $region91: #{tpu_custom_call.1} parent=75 // pred_region
          %522 = dma.done [#allocation9], 1024
        $region92: #{tpu_custom_call.1} parent=75 // pred_fallthru
          _
        // Predicated region
        $region93: #{tpu_custom_call.1} parent=75 // pred_check
          %p523 = pneg %p230
        $region94: #{tpu_custom_call.1} parent=75 // pred_check_branch
          %525 = sbr.rel (%p523) target = $region96
        $region95: #{tpu_custom_call.1} parent=75 // pred_region
          %526 = dma.done [#allocation9], 4096
        $region96: #{tpu_custom_call.1} parent=75 // pred_fallthru
          _
        // Predicated region
        $region97: #{tpu_custom_call.1} parent=75 // pred_check
          %p527 = pneg %p272
        $region98: #{tpu_custom_call.1} parent=75 // pred_check_branch
          %529 = sbr.rel (%p527) target = $region100
        $region99: #{tpu_custom_call.1} parent=75 // pred_region
          %530 = dma.done [#allocation12], 4096
        $region100: #{tpu_custom_call.1} parent=75 // pred_fallthru
          _
        %s531 = sand.u32 %s44, 1
        %s532 = scalar_lea.sflag [#allocation3], %s531
        %s533 = sand.u32 %s44, 1
        %s534 = smul.addr %s533, 8
        %s535 = scalar_lea.vmem [#allocation2], %s534
        %p536 = pneg %p57
        %p537 = pneg %p54
        %s538 = sand.u32 %s36, 1
        %s539 = scalar_lea.sflag [#allocation6], %s538
        %s540 = sand.u32 %s70, 1
        %s541 = scalar_lea.vmem [#allocation5], %s540
        %p542 = pneg %p83
        %p543 = pneg %p80
        %p544 = pneg %p104
        %p545 = pneg %p101
        %p546 = pneg %p125
        %p547 = pneg %p122
        %p548 = pneg %p146
        %p549 = pneg %p143
        %p550 = pneg %p167
        %p551 = pneg %p164
        %p552 = pneg %p188
        %p553 = pneg %p185
        %p554 = pneg %p209
        %p555 = pneg %p206
        %p556 = pneg %p230
        %p557 = pneg %p227
        %p558 = pneg %p251
        %p559 = pneg %p248
        %p560 = pneg %p272
        %p561 = pneg %p269
        %p562 = pneg %p293
        %p563 = pneg %p290
        %p564 = pneg %p314
        %p565 = pneg %p311
        %p566 = pneg %p335
        %p567 = pneg %p332
        %p568 = pneg %p361
        %p569 = pneg %p358
        %s570 = sand.u32 %s348, 1
        %s571 = scalar_lea.sflag [#allocation4], %s570
        %s572 = sand.u32 %s348, 1
        %s573 = smul.addr %s572, 8
        %s574 = scalar_lea.vmem [#allocation13], %s573
        %v576 = vld [vmem:[%s502] sm:$0xff]
        %v577 = vpack.c.bf16 %v576, %v576
        %v578 = vld [vmem:[#allocation7] sm:$0xff]
        %v579 = vld [vmem:[#allocation7 + $0x8] sm:$0xf]
        %v580 = vld [vmem:[#allocation7 + $0xc] sm:$0xff]
        %v581 = vld [vmem:[#allocation7 + $0x14] sm:$0xf]
        %v582 = vld [vmem:[#allocation7 + $0x18] sm:$0xff]
        %v583 = vld [vmem:[#allocation7 + $0x20] sm:$0xf]
        %v584 = vld [vmem:[#allocation7 + $0x24] sm:$0xff]
        %v585 = vld [vmem:[#allocation7 + $0x2c] sm:$0xf]
        %v586 = vld [vmem:[#allocation7 + $0x30] sm:$0xff]
        %v587 = vld [vmem:[#allocation7 + $0x38] sm:$0xf]
        %v588 = vld [vmem:[#allocation7 + $0x3c] sm:$0xff]
        %v589 = vld [vmem:[#allocation7 + $0x44] sm:$0xf]
        %v590 = vld [vmem:[#allocation7 + $0x48] sm:$0xff]
        %v591 = vld [vmem:[#allocation7 + $0x50] sm:$0xf]
        %v592 = vld [vmem:[#allocation7 + $0x54] sm:$0xff]
        %v593 = vld [vmem:[#allocation7 + $0x5c] sm:$0xf]
        %v594 = vld [vmem:[#allocation7 + $0x60] sm:$0xff]
        %v595 = vld [vmem:[#allocation7 + $0x68] sm:$0xf]
        %v596 = vld [vmem:[#allocation7 + $0x6c] sm:$0xff]
        %v597 = vld [vmem:[#allocation7 + $0x74] sm:$0xf]
        %v598 = vld [vmem:[#allocation7 + $0x78] sm:$0xff]
        %v599 = vld [vmem:[#allocation7 + $0x80] sm:$0xf]
        %v600 = vld [vmem:[#allocation7 + $0x84] sm:$0xff]
        %v601 = vld [vmem:[#allocation7 + $0x8c] sm:$0xf]
        %v602 = vld [vmem:[#allocation7 + $0x90] sm:$0xff]
        %v603 = vld [vmem:[#allocation7 + $0x98] sm:$0xf]
        %v604 = vld [vmem:[#allocation7 + $0x9c] sm:$0xff]
        %v605 = vld [vmem:[#allocation7 + $0xa4] sm:$0xf]
        %v606 = vld [vmem:[#allocation7 + $0xa8] sm:$0xff]
        %v607 = vld [vmem:[#allocation7 + $0xb0] sm:$0xf]
        %v608 = vld [vmem:[#allocation7 + $0xb4] sm:$0xff]
        %v609 = vld [vmem:[#allocation7 + $0xbc] sm:$0xf]
        %v610 = vld [vmem:[%s3] sm:$0x7]
        %v612 = vlaneseq
        %v613 = vshrl.u32 %v612, 7
        %v614 = vsub.s32 0, %v613
        %v615 = vrot.slane %v610, %v614
        %v616 = vlaneseq
        %v617 = vshrl.u32 %v616, 7
        %v618 = vsub.s32 1, %v617
        %v619 = vrot.slane %v610, %v618
        %v620 = vlaneseq
        %v621 = vshrl.u32 %v620, 7
        %v622 = vsub.s32 2, %v621
        %v623 = vrot.slane %v610, %v622
        %v659 = vunpack.c.l.b16 %v578
        %v660 = vunpack.c.h.b16 %v578
        %v661 = vunpack.c.l.b16 %v579
        %v662 = vunpack.c.l.b16 %v580
        %v663 = vunpack.c.h.b16 %v580
        %v664 = vunpack.c.l.b16 %v581
        %v665 = vunpack.c.l.b16 %v582
        %v666 = vunpack.c.h.b16 %v582
        %v667 = vunpack.c.l.b16 %v583
        %v668 = vunpack.c.l.b16 %v584
        %v669 = vunpack.c.h.b16 %v584
        %v670 = vunpack.c.l.b16 %v585
        %v671 = vunpack.c.l.b16 %v586
        %v672 = vunpack.c.h.b16 %v586
        %v673 = vunpack.c.l.b16 %v587
        %v674 = vunpack.c.l.b16 %v588
        %v675 = vunpack.c.h.b16 %v588
        %v676 = vunpack.c.l.b16 %v589
        %v677 = vunpack.c.l.b16 %v590
        %v678 = vunpack.c.h.b16 %v590
        %v679 = vunpack.c.l.b16 %v591
        %v680 = vunpack.c.l.b16 %v592
        %v681 = vunpack.c.h.b16 %v592
        %v682 = vunpack.c.l.b16 %v593
        %v683 = vunpack.c.l.b16 %v594
        %v684 = vunpack.c.h.b16 %v594
        %v685 = vunpack.c.l.b16 %v595
        %v686 = vunpack.c.l.b16 %v596
        %v687 = vunpack.c.h.b16 %v596
        %v688 = vunpack.c.l.b16 %v597
        %v689 = vunpack.c.l.b16 %v598
        %v690 = vunpack.c.h.b16 %v598
        %v691 = vunpack.c.l.b16 %v599
        %v692 = vunpack.c.l.b16 %v600
        %v693 = vunpack.c.h.b16 %v600
        %v694 = vunpack.c.l.b16 %v601
        %v695 = vunpack.c.l.b16 %v602
        %v696 = vunpack.c.h.b16 %v602
        %v697 = vunpack.c.l.b16 %v603
        %v698 = vunpack.c.l.b16 %v604
        %v699 = vunpack.c.h.b16 %v604
        %v700 = vunpack.c.l.b16 %v605
        %v701 = vunpack.c.l.b16 %v606
        %v702 = vunpack.c.h.b16 %v606
        %v703 = vunpack.c.l.b16 %v607
        %v704 = vunpack.c.l.b16 %v608
        %v705 = vunpack.c.h.b16 %v608
        %v706 = vunpack.c.l.b16 %v609
        %v707 = vpack.c.b16 %v662, %v659
        %v708 = vpack.c.b16 %v663, %v660
        %v709 = vpack.c.b16 %v664, %v661
        %v710 = vpack.c.b16 %v668, %v665
        %v711 = vpack.c.b16 %v669, %v666
        %v712 = vpack.c.b16 %v670, %v667
        %v713 = vpack.c.b16 %v674, %v671
        %v714 = vpack.c.b16 %v675, %v672
        %v715 = vpack.c.b16 %v676, %v673
        %v716 = vpack.c.b16 %v680, %v677
        %v717 = vpack.c.b16 %v681, %v678
        %v718 = vpack.c.b16 %v682, %v679
        %v719 = vpack.c.b16 %v686, %v683
        %v720 = vpack.c.b16 %v687, %v684
        %v721 = vpack.c.b16 %v688, %v685
        %v722 = vpack.c.b16 %v692, %v689
        %v723 = vpack.c.b16 %v693, %v690
        %v724 = vpack.c.b16 %v694, %v691
        %v725 = vpack.c.b16 %v698, %v695
        %v726 = vpack.c.b16 %v699, %v696
        %v727 = vpack.c.b16 %v700, %v697
        %v728 = vpack.c.b16 %v704, %v701
        %v729 = vpack.c.b16 %v705, %v702
        %v730 = vpack.c.b16 %v706, %v703
        %755 = vmatprep.subr.bf16.mxu0 %v708
        %756 = vmatpush1.bf16.msra.mxu0 %v707
        %757 = vmatprep.subr.bf16.mxu0 %v711
        %758 = vmatpush1.bf16.msra.mxu0 %v710
        %759 = vmatprep.subr.bf16.mxu0 %v714
        %760 = vmatpush1.bf16.msra.mxu0 %v713
        %761 = vmatprep.subr.bf16.mxu0 %v717
        %762 = vmatpush1.bf16.msra.mxu0 %v716
        %763 = vmatprep.subr.bf16.mxu0 %v720
        %764 = vmatpush1.bf16.msra.mxu0 %v719
        %765 = vmatprep.subr.bf16.mxu0 %v723
        %766 = vmatpush1.bf16.msra.mxu0 %v722
        %767 = vmatprep.subr.bf16.mxu0 %v726
        %768 = vmatpush1.bf16.msra.mxu0 %v725
        %769 = vmatprep.subr.bf16.mxu0 %v729
        %770 = vmatpush1.bf16.msra.mxu0 %v728
        %771 = vmatprep.subr.bf16.mxu0 0
        %772 = vmatpush1.bf16.msra.mxu0 0
        %773 = vmatprep.subr.bf16.mxu0 0
        %774 = vmatpush1.bf16.msra.mxu0 0
        %775 = vmatprep.subr.bf16.mxu0 0
        %776 = vmatpush1.bf16.msra.mxu0 0
        %777 = vmatprep.subr.bf16.mxu0 0
        %778 = vmatpush1.bf16.msra.mxu0 0
        %779 = vmatprep.subr.bf16.mxu0 0
        %780 = vmatpush1.bf16.msra.mxu0 0
        %781 = vmatprep.subr.bf16.mxu0 0
        %782 = vmatpush1.bf16.msra.mxu0 0
        %783 = vmatprep.subr.bf16.mxu0 0
        %784 = vmatpush1.bf16.msra.mxu0 0
        %785 = vmatprep.subr.bf16.mxu0 0
        %786 = vmatpush1.bf16.msra.mxu0 0
        %787 = vmatprep.mubr.bf16.mxu0 0
        %788 = vmatmul.mubr.bf16.gmra.mrb[0].mxu0 %v577
        %v789 = vpop.f32.mrb[0].mxu0
        %v790 = vadd.f32 %v615, %v789
        %v791 = vpop.f32.mrb[0].mxu0
        %v792 = vadd.f32 %v619, %v791
        %v793 = vpop.f32.mrb[0].mxu0
        %v794 = vpop.f32.mrb[0].mxu0
        %795 = vdwg.mxu0
        %796 = vmatprep.subr.bf16.mxu0 0
        %797 = vmatpush1.bf16.msra.mxu0 %v709
        %798 = vmatprep.subr.bf16.mxu0 0
        %799 = vmatpush1.bf16.msra.mxu0 %v712
        %800 = vmatprep.subr.bf16.mxu0 0
        %801 = vmatpush1.bf16.msra.mxu0 %v715
        %802 = vmatprep.subr.bf16.mxu0 0
        %803 = vmatpush1.bf16.msra.mxu0 %v718
        %804 = vmatprep.subr.bf16.mxu0 0
        %805 = vmatpush1.bf16.msra.mxu0 %v721
        %806 = vmatprep.subr.bf16.mxu0 0
        %807 = vmatpush1.bf16.msra.mxu0 %v724
        %808 = vmatprep.subr.bf16.mxu0 0
        %809 = vmatpush1.bf16.msra.mxu0 %v727
        %810 = vmatprep.subr.bf16.mxu0 0
        %811 = vmatpush1.bf16.msra.mxu0 %v730
        %812 = vmatprep.subr.bf16.mxu0 0
        %813 = vmatpush1.bf16.msra.mxu0 0
        %814 = vmatprep.subr.bf16.mxu0 0
        %815 = vmatpush1.bf16.msra.mxu0 0
        %816 = vmatprep.subr.bf16.mxu0 0
        %817 = vmatpush1.bf16.msra.mxu0 0
        %818 = vmatprep.subr.bf16.mxu0 0
        %819 = vmatpush1.bf16.msra.mxu0 0
        %820 = vmatprep.subr.bf16.mxu0 0
        %821 = vmatpush1.bf16.msra.mxu0 0
        %822 = vmatprep.subr.bf16.mxu0 0
        %823 = vmatpush1.bf16.msra.mxu0 0
        %824 = vmatprep.subr.bf16.mxu0 0
        %825 = vmatpush1.bf16.msra.mxu0 0
        %826 = vmatprep.subr.bf16.mxu0 0
        %827 = vmatpush1.bf16.msra.mxu0 0
        %828 = vmatprep.mubr.bf16.mxu0 0
        %829 = vmatmul.mubr.bf16.gmra.mrb[0].mxu0 %v577
        %v830 = vpop.f32.mrb[0].mxu0
        %v831 = vadd.f32 %v623, %v830
        %v832 = vpop.f32.mrb[0].mxu0
        %v833 = vpop.f32.mrb[0].mxu0
        %v834 = vpop.f32.mrb[0].mxu0
        %835 = vdwg.mxu0
        %v836 = vpack.c.bf16 %v790, %v790
        %v837 = vpack.c.bf16 %v792, %v792
        %v838 = vpack.c.bf16 %v831, %v831
        %v839 = vld [vmem:[%s510] sm:$0x1]
        %v841 = vlaneseq
        %v842 = vshrl.u32 %v841, 7
        %v843 = vsub.s32 0, %v842
        %v844 = vrot.slane %v839, %v843
        %846 = vmatprep.subr.bf16.mxu0 0
        %847 = vmatpush1.bf16.xpose.msra.mxu0 %v837
        %848 = vmatprep.subr.bf16.mxu0 0
        %849 = vmatpush1.bf16.xpose.msra.mxu0 0
        %850 = vmatprep.subr.bf16.mxu0 0
        %851 = vmatpush1.bf16.xpose.msra.mxu0 0
        %852 = vmatprep.subr.bf16.mxu0 0
        %853 = vmatpush1.bf16.xpose.msra.mxu0 0
        %854 = vmatprep.subr.bf16.mxu0 0
        %855 = vmatpush1.bf16.xpose.msra.mxu0 0
        %856 = vmatprep.subr.bf16.mxu0 0
        %857 = vmatpush1.bf16.xpose.msra.mxu0 0
        %858 = vmatprep.subr.bf16.mxu0 0
        %859 = vmatpush1.bf16.xpose.msra.mxu0 0
        %860 = vmatprep.subr.bf16.mxu0 0
        %861 = vmatpush1.bf16.xpose.msra.mxu0 0
        %862 = vmatprep.subr.bf16.mxu0 0
        %863 = vmatpush1.bf16.xpose.msra.mxu0 0
        %864 = vmatprep.subr.bf16.mxu0 0
        %865 = vmatpush1.bf16.xpose.msra.mxu0 0
        %866 = vmatprep.subr.bf16.mxu0 0
        %867 = vmatpush1.bf16.xpose.msra.mxu0 0
        %868 = vmatprep.subr.bf16.mxu0 0
        %869 = vmatpush1.bf16.xpose.msra.mxu0 0
        %870 = vmatprep.subr.bf16.mxu0 0
        %871 = vmatpush1.bf16.xpose.msra.mxu0 0
        %872 = vmatprep.subr.bf16.mxu0 0
        %873 = vmatpush1.bf16.xpose.msra.mxu0 0
        %874 = vmatprep.subr.bf16.mxu0 0
        %875 = vmatpush1.bf16.xpose.msra.mxu0 0
        %876 = vmatprep.subr.bf16.mxu0 0
        %877 = vmatpush1.bf16.xpose.msra.mxu0 0
        %878 = vmatprep.mubr.bf16.mxu0 0
        %879 = vmatmul.mubr.bf16.gmra.mrb[0].mxu0 %v836
        %v880 = vpop.f32.mrb[0].mxu0
        %v881 = vadd.f32 %v844, %v880
        %v882 = vpop.f32.mrb[0].mxu0
        %v883 = vpop.f32.mrb[0].mxu0
        %v884 = vpop.f32.mrb[0].mxu0
        %885 = vdwg.mxu0
        %vm886 = vcmask 64512
        %v887 = vsel %vm886, %v881, -inf
        %888 = vmax.xlane.f32.xlu0 %v887
        %v889 = vpop.xlane.xlu0 %888
        %v890 = vsub.f32 %v881, %v889
        %v891 = vmul.f32 %v890, 1.442695
        %v892 = vpow.pop %v891
        %v893 = vsel %vm886, %v892, 0.0
        %894 = vadd.xlane.f32.xlu0 %v893
        %v895 = vpop.xlane.xlu0 %894
        %v896 = vrcp.pop %v895
        %v897 = vmul.f32 %v892, %v896
        %v898 = vpack.c.bf16 %v897, %v897
        %v900 = vsel %vm886, %v898, 0
        %vm902 = vcmask 1043456
        %v904 = vsel %vm902, %v838, 0
        %906 = vmatprep.subr.bf16.mxu0 0
        %907 = vmatpush1.bf16.msra.mxu0 %v904
        %908 = vmatprep.subr.bf16.mxu0 0
        %909 = vmatpush1.bf16.msra.mxu0 0
        %910 = vmatprep.subr.bf16.mxu0 0
        %911 = vmatpush1.bf16.msra.mxu0 0
        %912 = vmatprep.subr.bf16.mxu0 0
        %913 = vmatpush1.bf16.msra.mxu0 0
        %914 = vmatprep.subr.bf16.mxu0 0
        %915 = vmatpush1.bf16.msra.mxu0 0
        %916 = vmatprep.subr.bf16.mxu0 0
        %917 = vmatpush1.bf16.msra.mxu0 0
        %918 = vmatprep.subr.bf16.mxu0 0
        %919 = vmatpush1.bf16.msra.mxu0 0
        %920 = vmatprep.subr.bf16.mxu0 0
        %921 = vmatpush1.bf16.msra.mxu0 0
        %922 = vmatprep.subr.bf16.mxu0 0
        %923 = vmatpush1.bf16.msra.mxu0 0
        %924 = vmatprep.subr.bf16.mxu0 0
        %925 = vmatpush1.bf16.msra.mxu0 0
        %926 = vmatprep.subr.bf16.mxu0 0
        %927 = vmatpush1.bf16.msra.mxu0 0
        %928 = vmatprep.subr.bf16.mxu0 0
        %929 = vmatpush1.bf16.msra.mxu0 0
        %930 = vmatprep.subr.bf16.mxu0 0
        %931 = vmatpush1.bf16.msra.mxu0 0
        %932 = vmatprep.subr.bf16.mxu0 0
        %933 = vmatpush1.bf16.msra.mxu0 0
        %934 = vmatprep.subr.bf16.mxu0 0
        %935 = vmatpush1.bf16.msra.mxu0 0
        %936 = vmatprep.subr.bf16.mxu0 0
        %937 = vmatpush1.bf16.msra.mxu0 0
        %938 = vmatprep.mubr.bf16.mxu0 0
        %939 = vmatmul.mubr.bf16.gmra.mrb[0].mxu0 %v900
        %v940 = vpop.f32.mrb[0].mxu0
        %v941 = vadd.f32 0.0, %v940
        %v942 = vpop.f32.mrb[0].mxu0
        %v943 = vpop.f32.mrb[0].mxu0
        %v944 = vpop.f32.mrb[0].mxu0
        %945 = vdwg.mxu0
        %v946 = vpack.c.bf16 %v941, %v941
        %v947 = vld [vmem:[#allocation8] sm:$0xf]
        %v948 = vld [vmem:[#allocation8 + $0x4] sm:$0xf]
        %v949 = vld [vmem:[#allocation8 + $0x8] sm:$0xf]
        %v950 = vld [vmem:[#allocation8 + $0xc] sm:$0xf]
        %v951 = vld [vmem:[#allocation8 + $0x10] sm:$0xf]
        %v952 = vld [vmem:[#allocation8 + $0x14] sm:$0xf]
        %v953 = vld [vmem:[#allocation8 + $0x18] sm:$0xf]
        %v954 = vld [vmem:[#allocation8 + $0x1c] sm:$0xf]
        %v955 = vld [vmem:[#allocation8 + $0x20] sm:$0xf]
        %v956 = vld [vmem:[#allocation8 + $0x24] sm:$0xf]
        %v957 = vld [vmem:[#allocation8 + $0x28] sm:$0xf]
        %v958 = vld [vmem:[#allocation8 + $0x2c] sm:$0xf]
        %v959 = vld [vmem:[#allocation8 + $0x30] sm:$0xf]
        %v960 = vld [vmem:[#allocation8 + $0x34] sm:$0xf]
        %v961 = vld [vmem:[#allocation8 + $0x38] sm:$0xf]
        %v962 = vld [vmem:[#allocation8 + $0x3c] sm:$0xf]
        %v963 = vld [vmem:[%s5] sm:$0x1]
        %v965 = vlaneseq
        %v966 = vshrl.u32 %v965, 7
        %v967 = vsub.s32 0, %v966
        %v968 = vrot.slane %v963, %v967
        %v986 = vunpack.c.l.b16 %v947
        %v987 = vunpack.c.l.b16 %v948
        %v988 = vunpack.c.l.b16 %v949
        %v989 = vunpack.c.l.b16 %v950
        %v990 = vunpack.c.l.b16 %v951
        %v991 = vunpack.c.l.b16 %v952
        %v992 = vunpack.c.l.b16 %v953
        %v993 = vunpack.c.l.b16 %v954
        %v994 = vunpack.c.l.b16 %v955
        %v995 = vunpack.c.l.b16 %v956
        %v996 = vunpack.c.l.b16 %v957
        %v997 = vunpack.c.l.b16 %v958
        %v998 = vunpack.c.l.b16 %v959
        %v999 = vunpack.c.l.b16 %v960
        %v1000 = vunpack.c.l.b16 %v961
        %v1001 = vunpack.c.l.b16 %v962
        %v1002 = vpack.c.b16 %v987, %v986
        %v1003 = vpack.c.b16 %v989, %v988
        %v1004 = vpack.c.b16 %v991, %v990
        %v1005 = vpack.c.b16 %v993, %v992
        %v1006 = vpack.c.b16 %v995, %v994
        %v1007 = vpack.c.b16 %v997, %v996
        %v1008 = vpack.c.b16 %v999, %v998
        %v1009 = vpack.c.b16 %v1001, %v1000
        %1018 = vmatprep.subr.bf16.mxu0 0
        %1019 = vmatpush1.bf16.msra.mxu0 %v1002
        %1020 = vmatprep.subr.bf16.mxu0 0
        %1021 = vmatpush1.bf16.msra.mxu0 %v1003
        %1022 = vmatprep.subr.bf16.mxu0 0
        %1023 = vmatpush1.bf16.msra.mxu0 %v1004
        %1024 = vmatprep.subr.bf16.mxu0 0
        %1025 = vmatpush1.bf16.msra.mxu0 %v1005
        %1026 = vmatprep.subr.bf16.mxu0 0
        %1027 = vmatpush1.bf16.msra.mxu0 %v1006
        %1028 = vmatprep.subr.bf16.mxu0 0
        %1029 = vmatpush1.bf16.msra.mxu0 %v1007
        %1030 = vmatprep.subr.bf16.mxu0 0
        %1031 = vmatpush1.bf16.msra.mxu0 %v1008
        %1032 = vmatprep.subr.bf16.mxu0 0
        %1033 = vmatpush1.bf16.msra.mxu0 %v1009
        %1034 = vmatprep.subr.bf16.mxu0 0
        %1035 = vmatpush1.bf16.msra.mxu0 0
        %1036 = vmatprep.subr.bf16.mxu0 0
        %1037 = vmatpush1.bf16.msra.mxu0 0
        %1038 = vmatprep.subr.bf16.mxu0 0
        %1039 = vmatpush1.bf16.msra.mxu0 0
        %1040 = vmatprep.subr.bf16.mxu0 0
        %1041 = vmatpush1.bf16.msra.mxu0 0
        %1042 = vmatprep.subr.bf16.mxu0 0
        %1043 = vmatpush1.bf16.msra.mxu0 0
        %1044 = vmatprep.subr.bf16.mxu0 0
        %1045 = vmatpush1.bf16.msra.mxu0 0
        %1046 = vmatprep.subr.bf16.mxu0 0
        %1047 = vmatpush1.bf16.msra.mxu0 0
        %1048 = vmatprep.subr.bf16.mxu0 0
        %1049 = vmatpush1.bf16.msra.mxu0 0
        %1050 = vmatprep.mubr.bf16.mxu0 0
        %1051 = vmatmul.mubr.bf16.gmra.mrb[0].mxu0 %v946
        %v1052 = vpop.f32.mrb[0].mxu0
        %v1053 = vadd.f32 %v968, %v1052
        %v1054 = vpop.f32.mrb[0].mxu0
        %v1055 = vpop.f32.mrb[0].mxu0
        %v1056 = vpop.f32.mrb[0].mxu0
        %1057 = vdwg.mxu0
        %v1058 = vadd.f32 %v576, %v1053
        %v1059 = vld [vmem:[%s6] sm:$0x1]
        %v1060 = vld [vmem:[%s7] sm:$0x1]
        %1061 = vadd.xlane.f32.xlu0 %v1058
        %v1062 = vpop.xlane.xlu0 %1061
        %v1063 = vrcp.pop 128.0
        %v1064 = vmul.f32 %v1062, %v1063
        %v1065 = vsub.f32 %v1058, %v1064
        %v1066 = vmul.f32 %v1065, %v1065
        %1067 = vadd.xlane.f32.xlu0 %v1066
        %v1068 = vpop.xlane.xlu0 %1067
        %v1069 = vmul.f32 %v1068, %v1063
        %v1070 = vadd.f32 %v1069, 1e-05
        %v1071 = vrsqrt.pop %v1070
        %v1072 = vmul.f32 %v1065, %v1071
        %v1074 = vlaneseq
        %v1075 = vshrl.u32 %v1074, 7
        %v1076 = vsub.s32 0, %v1075
        %v1077 = vrot.slane %v1059, %v1076
        %v1079 = vmul.f32 %v1072, %v1077
        %v1081 = vlaneseq
        %v1082 = vshrl.u32 %v1081, 7
        %v1083 = vsub.s32 0, %v1082
        %v1084 = vrot.slane %v1060, %v1083
        %v1086 = vadd.f32 %v1079, %v1084
        %v1087 = vpack.c.bf16 %v1086, %v1086
        %v1088 = vld [vmem:[#allocation10] sm:$0xff]
        %v1089 = vld [vmem:[#allocation10 + $0x8] sm:$0xff]
        %v1090 = vld [vmem:[#allocation10 + $0x10] sm:$0xff]
        %v1091 = vld [vmem:[#allocation10 + $0x18] sm:$0xff]
        %v1092 = vld [vmem:[#allocation10 + $0x20] sm:$0xff]
        %v1093 = vld [vmem:[#allocation10 + $0x28] sm:$0xff]
        %v1094 = vld [vmem:[#allocation10 + $0x30] sm:$0xff]
        %v1095 = vld [vmem:[#allocation10 + $0x38] sm:$0xff]
        %v1096 = vld [vmem:[#allocation10 + $0x40] sm:$0xff]
        %v1097 = vld [vmem:[#allocation10 + $0x48] sm:$0xff]
        %v1098 = vld [vmem:[#allocation10 + $0x50] sm:$0xff]
        %v1099 = vld [vmem:[#allocation10 + $0x58] sm:$0xff]
        %v1100 = vld [vmem:[#allocation10 + $0x60] sm:$0xff]
        %v1101 = vld [vmem:[#allocation10 + $0x68] sm:$0xff]
        %v1102 = vld [vmem:[#allocation10 + $0x70] sm:$0xff]
        %v1103 = vld [vmem:[#allocation10 + $0x78] sm:$0xff]
        %v1104 = vld [vmem:[#allocation10 + $0x80] sm:$0xff]
        %v1105 = vld [vmem:[#allocation10 + $0x88] sm:$0xff]
        %v1106 = vld [vmem:[#allocation10 + $0x90] sm:$0xff]
        %v1107 = vld [vmem:[#allocation10 + $0x98] sm:$0xff]
        %v1108 = vld [vmem:[#allocation10 + $0xa0] sm:$0xff]
        %v1109 = vld [vmem:[#allocation10 + $0xa8] sm:$0xff]
        %v1110 = vld [vmem:[#allocation10 + $0xb0] sm:$0xff]
        %v1111 = vld [vmem:[#allocation10 + $0xb8] sm:$0xff]
        %v1112 = vld [vmem:[#allocation10 + $0xc0] sm:$0xff]
        %v1113 = vld [vmem:[#allocation10 + $0xc8] sm:$0xff]
        %v1114 = vld [vmem:[#allocation10 + $0xd0] sm:$0xff]
        %v1115 = vld [vmem:[#allocation10 + $0xd8] sm:$0xff]
        %v1116 = vld [vmem:[#allocation10 + $0xe0] sm:$0xff]
        %v1117 = vld [vmem:[#allocation10 + $0xe8] sm:$0xff]
        %v1118 = vld [vmem:[#allocation10 + $0xf0] sm:$0xff]
        %v1119 = vld [vmem:[#allocation10 + $0xf8] sm:$0xff]
        %v1120 = vld [vmem:[%s9] sm:$0xf]
        %v1122 = vlaneseq
        %v1123 = vshrl.u32 %v1122, 7
        %v1124 = vsub.s32 0, %v1123
        %v1125 = vrot.slane %v1120, %v1124
        %v1126 = vlaneseq
        %v1127 = vshrl.u32 %v1126, 7
        %v1128 = vsub.s32 1, %v1127
        %v1129 = vrot.slane %v1120, %v1128
        %v1130 = vlaneseq
        %v1131 = vshrl.u32 %v1130, 7
        %v1132 = vsub.s32 2, %v1131
        %v1133 = vrot.slane %v1120, %v1132
        %v1134 = vlaneseq
        %v1135 = vshrl.u32 %v1134, 7
        %v1136 = vsub.s32 3, %v1135
        %v1137 = vrot.slane %v1120, %v1136
        %v1174 = vunpack.c.l.b16 %v1088
        %v1175 = vunpack.c.h.b16 %v1088
        %v1176 = vunpack.c.l.b16 %v1089
        %v1177 = vunpack.c.h.b16 %v1089
        %v1178 = vunpack.c.l.b16 %v1090
        %v1179 = vunpack.c.h.b16 %v1090
        %v1180 = vunpack.c.l.b16 %v1091
        %v1181 = vunpack.c.h.b16 %v1091
        %v1182 = vunpack.c.l.b16 %v1092
        %v1183 = vunpack.c.h.b16 %v1092
        %v1184 = vunpack.c.l.b16 %v1093
        %v1185 = vunpack.c.h.b16 %v1093
        %v1186 = vunpack.c.l.b16 %v1094
        %v1187 = vunpack.c.h.b16 %v1094
        %v1188 = vunpack.c.l.b16 %v1095
        %v1189 = vunpack.c.h.b16 %v1095
        %v1190 = vunpack.c.l.b16 %v1096
        %v1191 = vunpack.c.h.b16 %v1096
        %v1192 = vunpack.c.l.b16 %v1097
        %v1193 = vunpack.c.h.b16 %v1097
        %v1194 = vunpack.c.l.b16 %v1098
        %v1195 = vunpack.c.h.b16 %v1098
        %v1196 = vunpack.c.l.b16 %v1099
        %v1197 = vunpack.c.h.b16 %v1099
        %v1198 = vunpack.c.l.b16 %v1100
        %v1199 = vunpack.c.h.b16 %v1100
        %v1200 = vunpack.c.l.b16 %v1101
        %v1201 = vunpack.c.h.b16 %v1101
        %v1202 = vunpack.c.l.b16 %v1102
        %v1203 = vunpack.c.h.b16 %v1102
        %v1204 = vunpack.c.l.b16 %v1103
        %v1205 = vunpack.c.h.b16 %v1103
        %v1206 = vunpack.c.l.b16 %v1104
        %v1207 = vunpack.c.h.b16 %v1104
        %v1208 = vunpack.c.l.b16 %v1105
        %v1209 = vunpack.c.h.b16 %v1105
        %v1210 = vunpack.c.l.b16 %v1106
        %v1211 = vunpack.c.h.b16 %v1106
        %v1212 = vunpack.c.l.b16 %v1107
        %v1213 = vunpack.c.h.b16 %v1107
        %v1214 = vunpack.c.l.b16 %v1108
        %v1215 = vunpack.c.h.b16 %v1108
        %v1216 = vunpack.c.l.b16 %v1109
        %v1217 = vunpack.c.h.b16 %v1109
        %v1218 = vunpack.c.l.b16 %v1110
        %v1219 = vunpack.c.h.b16 %v1110
        %v1220 = vunpack.c.l.b16 %v1111
        %v1221 = vunpack.c.h.b16 %v1111
        %v1222 = vunpack.c.l.b16 %v1112
        %v1223 = vunpack.c.h.b16 %v1112
        %v1224 = vunpack.c.l.b16 %v1113
        %v1225 = vunpack.c.h.b16 %v1113
        %v1226 = vunpack.c.l.b16 %v1114
        %v1227 = vunpack.c.h.b16 %v1114
        %v1228 = vunpack.c.l.b16 %v1115
        %v1229 = vunpack.c.h.b16 %v1115
        %v1230 = vunpack.c.l.b16 %v1116
        %v1231 = vunpack.c.h.b16 %v1116
        %v1232 = vunpack.c.l.b16 %v1117
        %v1233 = vunpack.c.h.b16 %v1117
        %v1234 = vunpack.c.l.b16 %v1118
        %v1235 = vunpack.c.h.b16 %v1118
        %v1236 = vunpack.c.l.b16 %v1119
        %v1237 = vunpack.c.h.b16 %v1119
        %v1238 = vpack.c.b16 %v1178, %v1174
        %v1239 = vpack.c.b16 %v1179, %v1175
        %v1240 = vpack.c.b16 %v1180, %v1176
        %v1241 = vpack.c.b16 %v1181, %v1177
        %v1242 = vpack.c.b16 %v1186, %v1182
        %v1243 = vpack.c.b16 %v1187, %v1183
        %v1244 = vpack.c.b16 %v1188, %v1184
        %v1245 = vpack.c.b16 %v1189, %v1185
        %v1246 = vpack.c.b16 %v1194, %v1190
        %v1247 = vpack.c.b16 %v1195, %v1191
        %v1248 = vpack.c.b16 %v1196, %v1192
        %v1249 = vpack.c.b16 %v1197, %v1193
        %v1250 = vpack.c.b16 %v1202, %v1198
        %v1251 = vpack.c.b16 %v1203, %v1199
        %v1252 = vpack.c.b16 %v1204, %v1200
        %v1253 = vpack.c.b16 %v1205, %v1201
        %v1254 = vpack.c.b16 %v1210, %v1206
        %v1255 = vpack.c.b16 %v1211, %v1207
        %v1256 = vpack.c.b16 %v1212, %v1208
        %v1257 = vpack.c.b16 %v1213, %v1209
        %v1258 = vpack.c.b16 %v1218, %v1214
        %v1259 = vpack.c.b16 %v1219, %v1215
        %v1260 = vpack.c.b16 %v1220, %v1216
        %v1261 = vpack.c.b16 %v1221, %v1217
        %v1262 = vpack.c.b16 %v1226, %v1222
        %v1263 = vpack.c.b16 %v1227, %v1223
        %v1264 = vpack.c.b16 %v1228, %v1224
        %v1265 = vpack.c.b16 %v1229, %v1225
        %v1266 = vpack.c.b16 %v1234, %v1230
        %v1267 = vpack.c.b16 %v1235, %v1231
        %v1268 = vpack.c.b16 %v1236, %v1232
        %v1269 = vpack.c.b16 %v1237, %v1233
        %1302 = vmatprep.subr.bf16.mxu0 %v1239
        %1303 = vmatpush1.bf16.msra.mxu0 %v1238
        %1304 = vmatprep.subr.bf16.mxu0 %v1243
        %1305 = vmatpush1.bf16.msra.mxu0 %v1242
        %1306 = vmatprep.subr.bf16.mxu0 %v1247
        %1307 = vmatpush1.bf16.msra.mxu0 %v1246
        %1308 = vmatprep.subr.bf16.mxu0 %v1251
        %1309 = vmatpush1.bf16.msra.mxu0 %v1250
        %1310 = vmatprep.subr.bf16.mxu0 %v1255
        %1311 = vmatpush1.bf16.msra.mxu0 %v1254
        %1312 = vmatprep.subr.bf16.mxu0 %v1259
        %1313 = vmatpush1.bf16.msra.mxu0 %v1258
        %1314 = vmatprep.subr.bf16.mxu0 %v1263
        %1315 = vmatpush1.bf16.msra.mxu0 %v1262
        %1316 = vmatprep.subr.bf16.mxu0 %v1267
        %1317 = vmatpush1.bf16.msra.mxu0 %v1266
        %1318 = vmatprep.subr.bf16.mxu0 0
        %1319 = vmatpush1.bf16.msra.mxu0 0
        %1320 = vmatprep.subr.bf16.mxu0 0
        %1321 = vmatpush1.bf16.msra.mxu0 0
        %1322 = vmatprep.subr.bf16.mxu0 0
        %1323 = vmatpush1.bf16.msra.mxu0 0
        %1324 = vmatprep.subr.bf16.mxu0 0
        %1325 = vmatpush1.bf16.msra.mxu0 0
        %1326 = vmatprep.subr.bf16.mxu0 0
        %1327 = vmatpush1.bf16.msra.mxu0 0
        %1328 = vmatprep.subr.bf16.mxu0 0
        %1329 = vmatpush1.bf16.msra.mxu0 0
        %1330 = vmatprep.subr.bf16.mxu0 0
        %1331 = vmatpush1.bf16.msra.mxu0 0
        %1332 = vmatprep.subr.bf16.mxu0 0
        %1333 = vmatpush1.bf16.msra.mxu0 0
        %1334 = vmatprep.mubr.bf16.mxu0 0
        %1335 = vmatmul.mubr.bf16.gmra.mrb[0].mxu0 %v1087
        %v1336 = vpop.f32.mrb[0].mxu0
        %v1337 = vadd.f32 %v1125, %v1336
        %v1338 = vpop.f32.mrb[0].mxu0
        %v1339 = vadd.f32 %v1129, %v1338
        %v1340 = vpop.f32.mrb[0].mxu0
        %v1341 = vpop.f32.mrb[0].mxu0
        %1342 = vdwg.mxu0
        %1343 = vmatprep.subr.bf16.mxu0 %v1241
        %1344 = vmatpush1.bf16.msra.mxu0 %v1240
        %1345 = vmatprep.subr.bf16.mxu0 %v1245
        %1346 = vmatpush1.bf16.msra.mxu0 %v1244
        %1347 = vmatprep.subr.bf16.mxu0 %v1249
        %1348 = vmatpush1.bf16.msra.mxu0 %v1248
        %1349 = vmatprep.subr.bf16.mxu0 %v1253
        %1350 = vmatpush1.bf16.msra.mxu0 %v1252
        %1351 = vmatprep.subr.bf16.mxu0 %v1257
        %1352 = vmatpush1.bf16.msra.mxu0 %v1256
        %1353 = vmatprep.subr.bf16.mxu0 %v1261
        %1354 = vmatpush1.bf16.msra.mxu0 %v1260
        %1355 = vmatprep.subr.bf16.mxu0 %v1265
        %1356 = vmatpush1.bf16.msra.mxu0 %v1264
        %1357 = vmatprep.subr.bf16.mxu0 %v1269
        %1358 = vmatpush1.bf16.msra.mxu0 %v1268
        %1359 = vmatprep.subr.bf16.mxu0 0
        %1360 = vmatpush1.bf16.msra.mxu0 0
        %1361 = vmatprep.subr.bf16.mxu0 0
        %1362 = vmatpush1.bf16.msra.mxu0 0
        %1363 = vmatprep.subr.bf16.mxu0 0
        %1364 = vmatpush1.bf16.msra.mxu0 0
        %1365 = vmatprep.subr.bf16.mxu0 0
        %1366 = vmatpush1.bf16.msra.mxu0 0
        %1367 = vmatprep.subr.bf16.mxu0 0
        %1368 = vmatpush1.bf16.msra.mxu0 0
        %1369 = vmatprep.subr.bf16.mxu0 0
        %1370 = vmatpush1.bf16.msra.mxu0 0
        %1371 = vmatprep.subr.bf16.mxu0 0
        %1372 = vmatpush1.bf16.msra.mxu0 0
        %1373 = vmatprep.subr.bf16.mxu0 0
        %1374 = vmatpush1.bf16.msra.mxu0 0
        %1375 = vmatprep.mubr.bf16.mxu0 0
        %1376 = vmatmul.mubr.bf16.gmra.mrb[0].mxu0 %v1087
        %v1377 = vpop.f32.mrb[0].mxu0
        %v1378 = vadd.f32 %v1133, %v1377
        %v1379 = vpop.f32.mrb[0].mxu0
        %v1380 = vadd.f32 %v1137, %v1379
        %v1381 = vpop.f32.mrb[0].mxu0
        %v1382 = vpop.f32.mrb[0].mxu0
        %1383 = vdwg.mxu0
        %v1384 = vmul.f32 %v1337, %v1337
        %v1385 = vmul.f32 %v1339, %v1339
        %v1386 = vmul.f32 %v1378, %v1378
        %v1387 = vmul.f32 %v1380, %v1380
        %v1388 = vmul.f32 %v1337, %v1384
        %v1389 = vmul.f32 %v1339, %v1385
        %v1390 = vmul.f32 %v1378, %v1386
        %v1391 = vmul.f32 %v1380, %v1387
        %v1392 = vmul.f32 %v1388, 0.044715
        %v1393 = vmul.f32 %v1389, 0.044715
        %v1394 = vmul.f32 %v1390, 0.044715
        %v1395 = vmul.f32 %v1391, 0.044715
        %v1396 = vadd.f32 %v1337, %v1392
        %v1397 = vadd.f32 %v1339, %v1393
        %v1398 = vadd.f32 %v1378, %v1394
        %v1399 = vadd.f32 %v1380, %v1395
        %v1400 = vmul.f32 %v1396, 0.7978846
        %v1401 = vmul.f32 %v1397, 0.7978846
        %v1402 = vmul.f32 %v1398, 0.7978846
        %v1403 = vmul.f32 %v1399, 0.7978846
        %v1404 = vtanh.pop %v1400
        %v1405 = vtanh.pop %v1401
        %v1406 = vtanh.pop %v1402
        %v1407 = vtanh.pop %v1403
        %v1408 = vadd.f32 %v1404, 1.0
        %v1409 = vadd.f32 %v1405, 1.0
        %v1410 = vadd.f32 %v1406, 1.0
        %v1411 = vadd.f32 %v1407, 1.0
        %v1412 = vmul.f32 %v1408, 0.5
        %v1413 = vmul.f32 %v1409, 0.5
        %v1414 = vmul.f32 %v1410, 0.5
        %v1415 = vmul.f32 %v1411, 0.5
        %v1416 = vmul.f32 %v1337, %v1412
        %v1417 = vmul.f32 %v1339, %v1413
        %v1418 = vmul.f32 %v1378, %v1414
        %v1419 = vmul.f32 %v1380, %v1415
        %v1420 = vpack.c.bf16 %v1416, %v1416
        %v1421 = vpack.c.bf16 %v1417, %v1417
        %v1422 = vpack.c.bf16 %v1418, %v1418
        %v1423 = vpack.c.bf16 %v1419, %v1419
        %v1424 = vld [vmem:[#allocation11] sm:$0xf]
        %v1425 = vld [vmem:[#allocation11 + $0x4] sm:$0xf]
        %v1426 = vld [vmem:[#allocation11 + $0x8] sm:$0xf]
        %v1427 = vld [vmem:[#allocation11 + $0xc] sm:$0xf]
        %v1428 = vld [vmem:[#allocation11 + $0x10] sm:$0xf]
        %v1429 = vld [vmem:[#allocation11 + $0x14] sm:$0xf]
        %v1430 = vld [vmem:[#allocation11 + $0x18] sm:$0xf]
        %v1431 = vld [vmem:[#allocation11 + $0x1c] sm:$0xf]
        %v1432 = vld [vmem:[#allocation11 + $0x20] sm:$0xf]
        %v1433 = vld [vmem:[#allocation11 + $0x24] sm:$0xf]
        %v1434 = vld [vmem:[#allocation11 + $0x28] sm:$0xf]
        %v1435 = vld [vmem:[#allocation11 + $0x2c] sm:$0xf]
        %v1436 = vld [vmem:[#allocation11 + $0x30] sm:$0xf]
        %v1437 = vld [vmem:[#allocation11 + $0x34] sm:$0xf]
        %v1438 = vld [vmem:[#allocation11 + $0x38] sm:$0xf]
        %v1439 = vld [vmem:[#allocation11 + $0x3c] sm:$0xf]
        %v1440 = vld [vmem:[#allocation11 + $0x40] sm:$0xf]
        %v1441 = vld [vmem:[#allocation11 + $0x44] sm:$0xf]
        %v1442 = vld [vmem:[#allocation11 + $0x48] sm:$0xf]
        %v1443 = vld [vmem:[#allocation11 + $0x4c] sm:$0xf]
        %v1444 = vld [vmem:[#allocation11 + $0x50] sm:$0xf]
        %v1445 = vld [vmem:[#allocation11 + $0x54] sm:$0xf]
        %v1446 = vld [vmem:[#allocation11 + $0x58] sm:$0xf]
        %v1447 = vld [vmem:[#allocation11 + $0x5c] sm:$0xf]
        %v1448 = vld [vmem:[#allocation11 + $0x60] sm:$0xf]
        %v1449 = vld [vmem:[#allocation11 + $0x64] sm:$0xf]
        %v1450 = vld [vmem:[#allocation11 + $0x68] sm:$0xf]
        %v1451 = vld [vmem:[#allocation11 + $0x6c] sm:$0xf]
        %v1452 = vld [vmem:[#allocation11 + $0x70] sm:$0xf]
        %v1453 = vld [vmem:[#allocation11 + $0x74] sm:$0xf]
        %v1454 = vld [vmem:[#allocation11 + $0x78] sm:$0xf]
        %v1455 = vld [vmem:[#allocation11 + $0x7c] sm:$0xf]
        %v1456 = vld [vmem:[#allocation11 + $0x80] sm:$0xf]
        %v1457 = vld [vmem:[#allocation11 + $0x84] sm:$0xf]
        %v1458 = vld [vmem:[#allocation11 + $0x88] sm:$0xf]
        %v1459 = vld [vmem:[#allocation11 + $0x8c] sm:$0xf]
        %v1460 = vld [vmem:[#allocation11 + $0x90] sm:$0xf]
        %v1461 = vld [vmem:[#allocation11 + $0x94] sm:$0xf]
        %v1462 = vld [vmem:[#allocation11 + $0x98] sm:$0xf]
        %v1463 = vld [vmem:[#allocation11 + $0x9c] sm:$0xf]
        %v1464 = vld [vmem:[#allocation11 + $0xa0] sm:$0xf]
        %v1465 = vld [vmem:[#allocation11 + $0xa4] sm:$0xf]
        %v1466 = vld [vmem:[#allocation11 + $0xa8] sm:$0xf]
        %v1467 = vld [vmem:[#allocation11 + $0xac] sm:$0xf]
        %v1468 = vld [vmem:[#allocation11 + $0xb0] sm:$0xf]
        %v1469 = vld [vmem:[#allocation11 + $0xb4] sm:$0xf]
        %v1470 = vld [vmem:[#allocation11 + $0xb8] sm:$0xf]
        %v1471 = vld [vmem:[#allocation11 + $0xbc] sm:$0xf]
        %v1472 = vld [vmem:[#allocation11 + $0xc0] sm:$0xf]
        %v1473 = vld [vmem:[#allocation11 + $0xc4] sm:$0xf]
        %v1474 = vld [vmem:[#allocation11 + $0xc8] sm:$0xf]
        %v1475 = vld [vmem:[#allocation11 + $0xcc] sm:$0xf]
        %v1476 = vld [vmem:[#allocation11 + $0xd0] sm:$0xf]
        %v1477 = vld [vmem:[#allocation11 + $0xd4] sm:$0xf]
        %v1478 = vld [vmem:[#allocation11 + $0xd8] sm:$0xf]
        %v1479 = vld [vmem:[#allocation11 + $0xdc] sm:$0xf]
        %v1480 = vld [vmem:[#allocation11 + $0xe0] sm:$0xf]
        %v1481 = vld [vmem:[#allocation11 + $0xe4] sm:$0xf]
        %v1482 = vld [vmem:[#allocation11 + $0xe8] sm:$0xf]
        %v1483 = vld [vmem:[#allocation11 + $0xec] sm:$0xf]
        %v1484 = vld [vmem:[#allocation11 + $0xf0] sm:$0xf]
        %v1485 = vld [vmem:[#allocation11 + $0xf4] sm:$0xf]
        %v1486 = vld [vmem:[#allocation11 + $0xf8] sm:$0xf]
        %v1487 = vld [vmem:[#allocation11 + $0xfc] sm:$0xf]
        %v1488 = vld [vmem:[%s11] sm:$0x1]
        %v1490 = vlaneseq
        %v1491 = vshrl.u32 %v1490, 7
        %v1492 = vsub.s32 0, %v1491
        %v1493 = vrot.slane %v1488, %v1492
        %v1559 = vunpack.c.l.b16 %v1424
        %v1560 = vunpack.c.l.b16 %v1425
        %v1561 = vunpack.c.l.b16 %v1426
        %v1562 = vunpack.c.l.b16 %v1427
        %v1563 = vunpack.c.l.b16 %v1428
        %v1564 = vunpack.c.l.b16 %v1429
        %v1565 = vunpack.c.l.b16 %v1430
        %v1566 = vunpack.c.l.b16 %v1431
        %v1567 = vunpack.c.l.b16 %v1432
        %v1568 = vunpack.c.l.b16 %v1433
        %v1569 = vunpack.c.l.b16 %v1434
        %v1570 = vunpack.c.l.b16 %v1435
        %v1571 = vunpack.c.l.b16 %v1436
        %v1572 = vunpack.c.l.b16 %v1437
        %v1573 = vunpack.c.l.b16 %v1438
        %v1574 = vunpack.c.l.b16 %v1439
        %v1575 = vunpack.c.l.b16 %v1440
        %v1576 = vunpack.c.l.b16 %v1441
        %v1577 = vunpack.c.l.b16 %v1442
        %v1578 = vunpack.c.l.b16 %v1443
        %v1579 = vunpack.c.l.b16 %v1444
        %v1580 = vunpack.c.l.b16 %v1445
        %v1581 = vunpack.c.l.b16 %v1446
        %v1582 = vunpack.c.l.b16 %v1447
        %v1583 = vunpack.c.l.b16 %v1448
        %v1584 = vunpack.c.l.b16 %v1449
        %v1585 = vunpack.c.l.b16 %v1450
        %v1586 = vunpack.c.l.b16 %v1451
        %v1587 = vunpack.c.l.b16 %v1452
        %v1588 = vunpack.c.l.b16 %v1453
        %v1589 = vunpack.c.l.b16 %v1454
        %v1590 = vunpack.c.l.b16 %v1455
        %v1591 = vunpack.c.l.b16 %v1456
        %v1592 = vunpack.c.l.b16 %v1457
        %v1593 = vunpack.c.l.b16 %v1458
        %v1594 = vunpack.c.l.b16 %v1459
        %v1595 = vunpack.c.l.b16 %v1460
        %v1596 = vunpack.c.l.b16 %v1461
        %v1597 = vunpack.c.l.b16 %v1462
        %v1598 = vunpack.c.l.b16 %v1463
        %v1599 = vunpack.c.l.b16 %v1464
        %v1600 = vunpack.c.l.b16 %v1465
        %v1601 = vunpack.c.l.b16 %v1466
        %v1602 = vunpack.c.l.b16 %v1467
        %v1603 = vunpack.c.l.b16 %v1468
        %v1604 = vunpack.c.l.b16 %v1469
        %v1605 = vunpack.c.l.b16 %v1470
        %v1606 = vunpack.c.l.b16 %v1471
        %v1607 = vunpack.c.l.b16 %v1472
        %v1608 = vunpack.c.l.b16 %v1473
        %v1609 = vunpack.c.l.b16 %v1474
        %v1610 = vunpack.c.l.b16 %v1475
        %v1611 = vunpack.c.l.b16 %v1476
        %v1612 = vunpack.c.l.b16 %v1477
        %v1613 = vunpack.c.l.b16 %v1478
        %v1614 = vunpack.c.l.b16 %v1479
        %v1615 = vunpack.c.l.b16 %v1480
        %v1616 = vunpack.c.l.b16 %v1481
        %v1617 = vunpack.c.l.b16 %v1482
        %v1618 = vunpack.c.l.b16 %v1483
        %v1619 = vunpack.c.l.b16 %v1484
        %v1620 = vunpack.c.l.b16 %v1485
        %v1621 = vunpack.c.l.b16 %v1486
        %v1622 = vunpack.c.l.b16 %v1487
        %v1623 = vpack.c.b16 %v1560, %v1559
        %v1624 = vpack.c.b16 %v1562, %v1561
        %v1625 = vpack.c.b16 %v1564, %v1563
        %v1626 = vpack.c.b16 %v1566, %v1565
        %v1627 = vpack.c.b16 %v1568, %v1567
        %v1628 = vpack.c.b16 %v1570, %v1569
        %v1629 = vpack.c.b16 %v1572, %v1571
        %v1630 = vpack.c.b16 %v1574, %v1573
        %v1631 = vpack.c.b16 %v1576, %v1575
        %v1632 = vpack.c.b16 %v1578, %v1577
        %v1633 = vpack.c.b16 %v1580, %v1579
        %v1634 = vpack.c.b16 %v1582, %v1581
        %v1635 = vpack.c.b16 %v1584, %v1583
        %v1636 = vpack.c.b16 %v1586, %v1585
        %v1637 = vpack.c.b16 %v1588, %v1587
        %v1638 = vpack.c.b16 %v1590, %v1589
        %v1639 = vpack.c.b16 %v1592, %v1591
        %v1640 = vpack.c.b16 %v1594, %v1593
        %v1641 = vpack.c.b16 %v1596, %v1595
        %v1642 = vpack.c.b16 %v1598, %v1597
        %v1643 = vpack.c.b16 %v1600, %v1599
        %v1644 = vpack.c.b16 %v1602, %v1601
        %v1645 = vpack.c.b16 %v1604, %v1603
        %v1646 = vpack.c.b16 %v1606, %v1605
        %v1647 = vpack.c.b16 %v1608, %v1607
        %v1648 = vpack.c.b16 %v1610, %v1609
        %v1649 = vpack.c.b16 %v1612, %v1611
        %v1650 = vpack.c.b16 %v1614, %v1613
        %v1651 = vpack.c.b16 %v1616, %v1615
        %v1652 = vpack.c.b16 %v1618, %v1617
        %v1653 = vpack.c.b16 %v1620, %v1619
        %v1654 = vpack.c.b16 %v1622, %v1621
        %1687 = vmatprep.subr.bf16.mxu0 0
        %1688 = vmatpush1.bf16.msra.mxu0 %v1623
        %1689 = vmatprep.subr.bf16.mxu0 0
        %1690 = vmatpush1.bf16.msra.mxu0 %v1624
        %1691 = vmatprep.subr.bf16.mxu0 0
        %1692 = vmatpush1.bf16.msra.mxu0 %v1625
        %1693 = vmatprep.subr.bf16.mxu0 0
        %1694 = vmatpush1.bf16.msra.mxu0 %v1626
        %1695 = vmatprep.subr.bf16.mxu0 0
        %1696 = vmatpush1.bf16.msra.mxu0 %v1627
        %1697 = vmatprep.subr.bf16.mxu0 0
        %1698 = vmatpush1.bf16.msra.mxu0 %v1628
        %1699 = vmatprep.subr.bf16.mxu0 0
        %1700 = vmatpush1.bf16.msra.mxu0 %v1629
        %1701 = vmatprep.subr.bf16.mxu0 0
        %1702 = vmatpush1.bf16.msra.mxu0 %v1630
        %1703 = vmatprep.subr.bf16.mxu0 0
        %1704 = vmatpush1.bf16.msra.mxu0 %v1631
        %1705 = vmatprep.subr.bf16.mxu0 0
        %1706 = vmatpush1.bf16.msra.mxu0 %v1632
        %1707 = vmatprep.subr.bf16.mxu0 0
        %1708 = vmatpush1.bf16.msra.mxu0 %v1633
        %1709 = vmatprep.subr.bf16.mxu0 0
        %1710 = vmatpush1.bf16.msra.mxu0 %v1634
        %1711 = vmatprep.subr.bf16.mxu0 0
        %1712 = vmatpush1.bf16.msra.mxu0 %v1635
        %1713 = vmatprep.subr.bf16.mxu0 0
        %1714 = vmatpush1.bf16.msra.mxu0 %v1636
        %1715 = vmatprep.subr.bf16.mxu0 0
        %1716 = vmatpush1.bf16.msra.mxu0 %v1637
        %1717 = vmatprep.subr.bf16.mxu0 0
        %1718 = vmatpush1.bf16.msra.mxu0 %v1638
        %1719 = vmatprep.mubr.bf16.mxu0 %v1421
        %1720 = vmatmul.mubr.bf16.gmra.mrb[0].mxu0 %v1420
        %v1721 = vpop.f32.mrb[0].mxu0
        %v1722 = vadd.f32 %v1493, %v1721
        %v1723 = vpop.f32.mrb[0].mxu0
        %v1724 = vpop.f32.mrb[0].mxu0
        %v1725 = vpop.f32.mrb[0].mxu0
        %1726 = vdwg.mxu0
        %1727 = vmatprep.subr.bf16.mxu0 0
        %1728 = vmatpush1.bf16.msra.mxu0 %v1639
        %1729 = vmatprep.subr.bf16.mxu0 0
        %1730 = vmatpush1.bf16.msra.mxu0 %v1640
        %1731 = vmatprep.subr.bf16.mxu0 0
        %1732 = vmatpush1.bf16.msra.mxu0 %v1641
        %1733 = vmatprep.subr.bf16.mxu0 0
        %1734 = vmatpush1.bf16.msra.mxu0 %v1642
        %1735 = vmatprep.subr.bf16.mxu0 0
        %1736 = vmatpush1.bf16.msra.mxu0 %v1643
        %1737 = vmatprep.subr.bf16.mxu0 0
        %1738 = vmatpush1.bf16.msra.mxu0 %v1644
        %1739 = vmatprep.subr.bf16.mxu0 0
        %1740 = vmatpush1.bf16.msra.mxu0 %v1645
        %1741 = vmatprep.subr.bf16.mxu0 0
        %1742 = vmatpush1.bf16.msra.mxu0 %v1646
        %1743 = vmatprep.subr.bf16.mxu0 0
        %1744 = vmatpush1.bf16.msra.mxu0 %v1647
        %1745 = vmatprep.subr.bf16.mxu0 0
        %1746 = vmatpush1.bf16.msra.mxu0 %v1648
        %1747 = vmatprep.subr.bf16.mxu0 0
        %1748 = vmatpush1.bf16.msra.mxu0 %v1649
        %1749 = vmatprep.subr.bf16.mxu0 0
        %1750 = vmatpush1.bf16.msra.mxu0 %v1650
        %1751 = vmatprep.subr.bf16.mxu0 0
        %1752 = vmatpush1.bf16.msra.mxu0 %v1651
        %1753 = vmatprep.subr.bf16.mxu0 0
        %1754 = vmatpush1.bf16.msra.mxu0 %v1652
        %1755 = vmatprep.subr.bf16.mxu0 0
        %1756 = vmatpush1.bf16.msra.mxu0 %v1653
        %1757 = vmatprep.subr.bf16.mxu0 0
        %1758 = vmatpush1.bf16.msra.mxu0 %v1654
        %1759 = vmatprep.mubr.bf16.mxu0 %v1423
        %1760 = vmatmul.mubr.bf16.gmra.mrb[0].mxu0 %v1422
        %v1761 = vpop.f32.mrb[0].mxu0
        %v1762 = vadd.f32 %v1722, %v1761
        %v1763 = vpop.f32.mrb[0].mxu0
        %v1764 = vpop.f32.mrb[0].mxu0
        %v1765 = vpop.f32.mrb[0].mxu0
        %1766 = vdwg.mxu0
        %v1767 = vadd.f32 %v1086, %v1762
        %v1768 = vld [vmem:[%s12] sm:$0x1]
        %v1769 = vld [vmem:[%s13] sm:$0x1]
        %1770 = vadd.xlane.f32.xlu0 %v1767
        %v1771 = vpop.xlane.xlu0 %1770
        %v1772 = vmul.f32 %v1771, %v1063
        %v1773 = vsub.f32 %v1767, %v1772
        %v1774 = vmul.f32 %v1773, %v1773
        %1775 = vadd.xlane.f32.xlu0 %v1774
        %v1776 = vpop.xlane.xlu0 %1775
        %v1777 = vmul.f32 %v1776, %v1063
        %v1778 = vadd.f32 %v1777, 1e-05
        %v1779 = vrsqrt.pop %v1778
        %v1780 = vmul.f32 %v1773, %v1779
        %v1782 = vlaneseq
        %v1783 = vshrl.u32 %v1782, 7
        %v1784 = vsub.s32 0, %v1783
        %v1785 = vrot.slane %v1768, %v1784
        %v1787 = vmul.f32 %v1780, %v1785
        %v1789 = vlaneseq
        %v1790 = vshrl.u32 %v1789, 7
        %v1791 = vsub.s32 0, %v1790
        %v1792 = vrot.slane %v1769, %v1791
        %v1794 = vadd.f32 %v1787, %v1792
        %1795 = vst [vmem:[%s574] sm:$0xff] %v1794
        %s1796 = sand.u32 %s348, 1
        %s1797 = scalar_lea.sflag [#allocation4], %s1796
        %s1798 = sand.u32 %s348, 1
        %s1799 = smul.addr %s1798, 8
        %s1800 = scalar_lea.vmem [#allocation13], %s1799
        // Predicated region
        $region101: #{tpu_custom_call.1} parent=75 // pred_check
          %p1801 = pneg %p358
        $region102: #{tpu_custom_call.1} parent=75 // pred_check_branch
          %1803 = sbr.rel (%p1801) target = $region104
        $region103: #{tpu_custom_call.1} parent=75 // pred_region
          %s1805 = ssub.s32 128, 128
          %1806 = vsyncadd %s1797, %s1805
          %s1807 = smul.addr %s36, 128
          %s1808 = scalar_lea.hbm %s14, %s1807
          %s1810 = sshll.u32 %s1800, 4
          %s1811 = int_to_ptr.vmem [resolvable:$true] %s1810
          %1813 = dma.vmem_to_hbm [thread:$0]  %s1811, 128, %s1808, %s1797
        $region104: #{tpu_custom_call.1} parent=75 // pred_fallthru
          _
      $region76: #{tpu_custom_call.1} parent=5 // pred_fallthru
        _
      %p1814 = scmp.le.s32.totalorder 2, %s31
      // Predicated region
      $region105: #{tpu_custom_call.1} parent=5 // pred_check
        %p1815 = pneg %p1814
      $region106: #{tpu_custom_call.1} parent=5 // pred_check_branch
        %1817 = sbr.rel (%p1815) target = $region108
      $region107: #{tpu_custom_call.1} parent=5 // pred_region
        %s1818 = ssub.s32 %s31, 2
        // Predicated region
        $region109: #{tpu_custom_call.1} parent=107 // pred_check
          %p1819 = pneg %p364
        $region110: #{tpu_custom_call.1} parent=107 // pred_check_branch
          %1821 = sbr.rel (%p1819) target = $region112
        $region111: #{tpu_custom_call.1} parent=107 // pred_region
          %s1822 = sand.u32 %s349, 1
          %s1823 = scalar_lea.sflag [#allocation4], %s1822
          %s1824 = sand.u32 %s349, 1
          %s1825 = smul.addr %s1824, 8
          %s1826 = scalar_lea.vmem [#allocation13], %s1825
          %1827 = dma.done %s1823, 128
        $region112: #{tpu_custom_call.1} parent=107 // pred_fallthru
          _
      $region108: #{tpu_custom_call.1} parent=5 // pred_fallthru
        _
    $region6: #{tpu_custom_call.1} parent=1 // loop_footer
      %s35 = sadd.s32 1, %s31
    $region7: #{tpu_custom_call.1} parent=1 // loop_footer_branch
      %30 = sbr.rel target = $region3
    $region8: #{tpu_custom_call.1} parent=1 // loop_exit
      _
    %1828 = vsyncpa [#allocation3], 1
    %s1829 = scalar_lea.sflag [#allocation3], 1
    %1830 = vsyncpa %s1829, 1
    %1831 = vsyncpa [#allocation6], 1
    %s1832 = scalar_lea.sflag [#allocation6], 1
    %1833 = vsyncpa %s1832, 1
    %1834 = vsyncpa [#allocation9], 1
    %1835 = vsyncpa [#allocation12], 1
    %1836 = vsyncpa [#allocation4], 1
    %s1837 = scalar_lea.sflag [#allocation4], 1
    %1838 = vsyncpa %s1837, 1

</llo_original>
